<compile_context>
chip_gen: v7x
topology: tpu7x:2x2x1
jax: 0.10.0
libtpu: 0.0.40
codegen_flags: <defaults>
</compile_context>

<pallas_src>
import math
import jax
import jax.numpy as jnp
from jax.experimental import pallas as pl
from jax.experimental.pallas import tpu as pltpu

CLA_HIDDEN = 128
HEADS = 2
PER_HEAD = CLA_HIDDEN // HEADS  # 64


def _make_kernel(S):
    """Kernel closure over the (static) sequence length S."""

    def kernel(hid_ref, mask_ref, w0_ref, wcat_ref, bias_ref, w2_ref, b2_ref,
               out_ref):
        f32 = jnp.float32
        bf16 = jnp.bfloat16
        H = CLA_HIDDEN
        rows, _ = hid_ref.shape          # rows = b_tile * S
        bt = rows // S

        # Stacked biases: rows = [b0, bq, bk, bv, bf, b1]
        b0 = bias_ref[0:1, :]
        bq = bias_ref[1:2, :]
        bk = bias_ref[2:3, :]
        bv = bias_ref[3:4, :]
        bfi = bias_ref[4:5, :]
        b1 = bias_ref[5:6, :]

        # Concatenated weights: columns = [wq | wk | wv | wf | w1]
        w0 = w0_ref[...]
        wq = wcat_ref[:, 0:H]
        wkv = wcat_ref[:, H:3 * H]        # fused K|V projection (128, 256)
        wf = wcat_ref[:, 3 * H:4 * H]
        w1 = wcat_ref[:, 4 * H:5 * H]

        # ---- layer 0 (tanh Linear) over all bt*S rows (needed for K and V) --
        h0 = jnp.tanh(jnp.dot(hid_ref[...], w0,
                              preferred_element_type=f32) + b0)      # (rows,128) f32
        h0b = h0.astype(bf16)

        # Fused K / V projection (kept in f32 for the VPU attention math).
        kv = jnp.dot(h0b, wkv, preferred_element_type=f32)           # (rows, 256)
        k3 = (kv[:, :H] + bk).reshape(bt, S, H)                      # (bt,S,128) f32
        v3 = (kv[:, H:] + bv).reshape(bt, S, H)                      # (bt,S,128) f32

        # ---- query: first token only, reusing layer-0 output ---------------
        # Valid because pooling == 'first' only uses attention row 0 AND the
        # FastBERT additive mask is identical across query rows.
        h0_first = h0.reshape(bt, S, H)[:, 0, :]                     # (bt,128) f32
        q = jnp.dot(h0_first.astype(bf16), wq,
                    preferred_element_type=f32) + bq                 # (bt,128) f32

        m = mask_ref[...]                                            # (bt, S) f32
        scale = 1.0 / math.sqrt(PER_HEAD)

        # Attention on the VPU/XLU: one query row per batch element, so the
        # scores/context are elementwise products + reductions, not matmuls.
        prod = q[:, None, :] * k3                                    # (bt,S,128) VPU
        s0 = jnp.sum(prod[:, :, :PER_HEAD], axis=-1) * scale + m     # (bt, S)
        s1 = jnp.sum(prod[:, :, PER_HEAD:], axis=-1) * scale + m     # (bt, S)

        def softmax_row(s):
            # Keep the row-max subtraction for safety with arbitrary params.
            s = s - jnp.max(s, axis=-1, keepdims=True)
            e = jnp.exp(s)
            return e * pl.reciprocal(jnp.sum(e, axis=-1, keepdims=True),
                                     approx=True)

        p0 = softmax_row(s0)                                         # (bt, S)
        p1 = softmax_row(s1)                                         # (bt, S)

        ctx0 = jnp.sum(p0[:, :, None] * v3[:, :, :PER_HEAD], axis=1)  # (bt,64) f32
        ctx1 = jnp.sum(p1[:, :, None] * v3[:, :, PER_HEAD:], axis=1)  # (bt,64) f32

        # final_linear without a lane concat: wf split along its input rows.
        attn = (jnp.dot(ctx0.astype(bf16), wf[0:PER_HEAD, :],
                        preferred_element_type=f32)
                + jnp.dot(ctx1.astype(bf16), wf[PER_HEAD:H, :],
                          preferred_element_type=f32)
                + bfi)                                               # (bt, 128)

        # output_layer_1 + tanh, output_layer_2 (logits padded to 128 lanes)
        o1 = jnp.tanh(jnp.dot(attn.astype(bf16), w1,
                              preferred_element_type=f32) + b1)
        out_ref[...] = (jnp.dot(o1.astype(bf16), w2_ref[...],
                                preferred_element_type=f32) + b2_ref[...])

    return kernel


def _tpu_generation():
    """Best-effort TPU generation query (7 for v7x, 6/5 for v6e/v5e)."""
    try:
        kind = jax.devices()[0].device_kind.lower()
    except Exception:
        return 6
    for g in (7, 6, 5, 4):
        if f"v{g}" in kind:
            return g
    return 6


def _vmem_cap_bytes(gen):
    # v7x: 64 MiB physical per TC -> leave headroom; v5e/v6e: 128 MiB physical.
    if gen >= 7:
        return 48 * 1024 * 1024
    return 96 * 1024 * 1024


def _max_b_tile_for_vmem(S, d_in, labels_pad, budget):
    """Largest batch-tile (multiple of 8) whose working set fits the budget."""
    H = CLA_HIDDEN
    # Streamed, double-buffered per batch row: hidden (bf16), mask, logits out.
    stream = 2 * (S * d_in * 2 + S * 4 + labels_pad * 4)
    # f32 intermediates live at once per batch row: h0, kv(256), k3, v3, prod.
    live = S * (H + 2 * H + H + H + H) * 4
    per_row = stream + live
    const = 2 * (d_in * H * 2 + H * 5 * H * 2 + 6 * H * 4
                 + H * labels_pad * 2 + labels_pad * 4)
    avail = budget - const - (8 << 20)     # headroom for Mosaic internal scratch
    if avail <= per_row:
        return 8
    return max(8, int((avail // per_row) // 8 * 8))


def _pick_b_tile(B, S, d_in, labels_pad, gen, vmem_cap):
    B8 = 8 * pl.cdiv(B, 8)
    bt_max = _max_b_tile_for_vmem(S, d_in, labels_pad, vmem_cap)
    if gen >= 7:
        # 2 TensorCores: take an even 2-way split only if each half still has
        # >= ~256 MXU rows for the layer-0 / K|V projections; otherwise the
        # split is pure per-step overhead and one step wins.
        half = 8 * pl.cdiv(pl.cdiv(B, 2), 8)
        if half * S >= 256:
            return min(half, bt_max)
    # Single TensorCore (v5e/v6e): the largest VMEM-fitting tile -> fewest
    # grid steps (one step for the demo sizes).
    return min(B8, bt_max)


def classifier_forward(hidden, token_mask, params, b_tile=None):
    """hidden: (B, S, D_in) f32; token_mask: (B, S) f32 (1 = valid, 0 = pad)."""
    B, S, D_in = hidden.shape
    labels = params["w2t"].shape[1]
    H = CLA_HIDDEN

    gen = _tpu_generation()
    vmem_cap = _vmem_cap_bytes(gen)
    labels_pad = pl.cdiv(labels, 128) * 128
    if b_tile is None:
        b_tile = _pick_b_tile(B, S, D_in, labels_pad, gen, vmem_cap)
    B_pad = pl.cdiv(B, b_tile) * b_tile

    hid = hidden
    msk = token_mask
    if B_pad != B:
        hid = jnp.pad(hid, ((0, B_pad - B), (0, 0), (0, 0)))
        # Padded batch rows keep token_mask = 1.0 (valid) over zero hidden
        # states: the softmax stays finite and the rows are sliced away below.
        msk = jnp.pad(msk, ((0, B_pad - B), (0, 0)), constant_values=1.0)

    # Sublane-dense hidden stream: flat (B_pad*S, D_in) bf16.
    hid_flat = hid.astype(jnp.bfloat16).reshape(B_pad * S, D_in)
    # Compact additive mask: one row per batch element (FastBERT's (B,S,S)
    # mask is this row repeated over query positions).
    mask_add = ((1.0 - msk) * -10000.0).astype(jnp.float32)          # (B_pad, S)

    w0 = params["w0t"].astype(jnp.bfloat16)
    wcat = jnp.concatenate(
        [params["wqt"], params["wkt"], params["wvt"], params["wft"],
         params["w1t"]], axis=1).astype(jnp.bfloat16)                # (128, 640)
    bias6 = jnp.concatenate(
        [params["b0"], params["bq"], params["bk"], params["bv"],
         params["bf"], params["b1"]], axis=0).astype(jnp.float32)    # (6, 128)
    w2p = jnp.zeros((H, labels_pad), jnp.bfloat16).at[:, :labels].set(
        params["w2t"].astype(jnp.bfloat16))
    b2p = jnp.zeros((1, labels_pad), jnp.float32).at[:, :labels].set(params["b2"])

    grid = (B_pad // b_tile,)
    kernel = _make_kernel(S)

    out = pl.pallas_call(
        kernel,
        out_shape=jax.ShapeDtypeStruct((B_pad, labels_pad), jnp.float32),
        grid_spec=pltpu.PrefetchScalarGridSpec(
            num_scalar_prefetch=0,
            grid=grid,
            in_specs=[
                pl.BlockSpec((b_tile * S, D_in), lambda b: (b, 0)),  # hidden (flat)
                pl.BlockSpec((b_tile, S), lambda b: (b, 0)),         # additive mask
                pl.BlockSpec(w0.shape, lambda b: (0, 0)),
                pl.BlockSpec(wcat.shape, lambda b: (0, 0)),
                pl.BlockSpec(bias6.shape, lambda b: (0, 0)),
                pl.BlockSpec(w2p.shape, lambda b: (0, 0)),
                pl.BlockSpec(b2p.shape, lambda b: (0, 0)),
            ],
            out_specs=pl.BlockSpec((b_tile, labels_pad), lambda b: (b, 0)),
        ),
        compiler_params=pltpu.CompilerParams(
            dimension_semantics=("parallel",),
            vmem_limit_bytes=vmem_cap),
    )(hid_flat, mask_add, w0, wcat, bias6, w2p, b2p)

    return out[:B, :labels]


def init_params(key, input_size, labels_num):
    """Deterministic synthetic params. Linear weights stored pre-transposed (in, out)."""
    keys = jax.random.split(key, 14)
    s = 0.05

    def w(k, shape):
        return s * jax.random.normal(k, shape, dtype=jnp.float32)

    return {
        "w0t": w(keys[0], (input_size, CLA_HIDDEN)),
        "b0":  w(keys[1], (1, CLA_HIDDEN)),
        "wqt": w(keys[2], (CLA_HIDDEN, CLA_HIDDEN)),
        "bq":  w(keys[3], (1, CLA_HIDDEN)),
        "wkt": w(keys[4], (CLA_HIDDEN, CLA_HIDDEN)),
        "bk":  w(keys[5], (1, CLA_HIDDEN)),
        "wvt": w(keys[6], (CLA_HIDDEN, CLA_HIDDEN)),
        "bv":  w(keys[7], (1, CLA_HIDDEN)),
        "wft": w(keys[8], (CLA_HIDDEN, CLA_HIDDEN)),
        "bf":  w(keys[9], (1, CLA_HIDDEN)),
        "w1t": w(keys[10], (CLA_HIDDEN, CLA_HIDDEN)),
        "b1":  w(keys[11], (1, CLA_HIDDEN)),
        "w2t": w(keys[12], (CLA_HIDDEN, labels_num)),
        "b2":  w(keys[13], (1, labels_num)),
    }


def reference_forward(hidden, token_mask, p):
    """Pure-JAX f32 reference mirroring the PyTorch module (eval, pooling='first')."""
    B, S, _ = hidden.shape
    mask_add = (1.0 - jnp.broadcast_to(token_mask[:, None, :], (B, S, S))) * -10000.0
    h0 = jnp.tanh(hidden @ p["w0t"] + p["b0"])
    q = h0 @ p["wqt"] + p["bq"]
    k = h0 @ p["wkt"] + p["bk"]
    v = h0 @ p["wvt"] + p["bv"]

    def split(x):
        return x.reshape(B, S, HEADS, PER_HEAD).transpose(0, 2, 1, 3)

    qh, kh, vh = split(q), split(k), split(v)
    scores = jnp.einsum("bhqd,bhkd->bhqk", qh, kh) / math.sqrt(PER_HEAD)
    scores = scores + mask_add[:, None, :, :]
    probs = jax.nn.softmax(scores, axis=-1)
    ctx = jnp.einsum("bhqk,bhkd->bhqd", probs, vh)
    ctx = ctx.transpose(0, 2, 1, 3).reshape(B, S, CLA_HIDDEN)
    attn = ctx @ p["wft"] + p["bf"]
    pooled = attn[:, 0, :]
    o1 = jnp.tanh(pooled @ p["w1t"] + p["b1"])
    return o1 @ p["w2t"] + p["b2"]


if __name__ == "__main__":
    B, S, D_IN, LABELS = 16, 8, 32, 3

    key = jax.random.PRNGKey(0)
    k_hid, k_par = jax.random.split(key)

    hidden = jax.random.normal(k_hid, (B, S, D_IN), dtype=jnp.float32)

    # token mask: most rows fully valid, a couple with padded tails
    token_mask = jnp.ones((B, S), dtype=jnp.float32)
    token_mask = token_mask.at[1, S - 2:].set(0.0)
    token_mask = token_mask.at[3, S - 5:].set(0.0)

    params = init_params(k_par, D_IN, LABELS)

    fwd = jax.jit(lambda h, m: classifier_forward(h, m, params))
    logits = fwd(hidden, token_mask)
    jax.block_until_ready(logits)

    ref = reference_forward(hidden, token_mask, params)
    assert logits.shape == (B, LABELS)
    # bf16 MXU inputs with f32 accumulation + approx softmax reciprocal
    # -> ~1e-3-level deviation from the pure-f32 reference; 2e-2 gives margin.
    max_err = float(jnp.max(jnp.abs(logits - ref)))
    assert jnp.allclose(logits, ref, atol=2e-2, rtol=2e-2), f"max abs err {max_err}"
    print("KERNEL_OK")
</pallas_src>

<mosaic_0001>
module attributes {stable_mosaic.version = 11 : i64} {
  func.func @kernel(%arg0: i32, %arg1: memref<128x32xbf16, #tpu.memory_space<vmem>>, %arg2: memref<16x8xf32, #tpu.memory_space<vmem>>, %arg3: memref<32x128xbf16, #tpu.memory_space<vmem>>, %arg4: memref<128x640xbf16, #tpu.memory_space<vmem>>, %arg5: memref<6x128xf32, #tpu.memory_space<vmem>>, %arg6: memref<128x128xbf16, #tpu.memory_space<vmem>>, %arg7: memref<1x128xf32, #tpu.memory_space<vmem>>, %arg8: memref<16x128xf32, #tpu.memory_space<vmem>>) attributes {dimension_semantics = [#tpu.dimension_semantics<parallel>], iteration_bounds = array<i64: 1>, scalar_prefetch = 0 : i64, scratch_operands = 0 : i64, tpu.core_type = #tpu.core_type<tc>, window_params = [{transform_indices = @transform_0, window_bounds = array<i64: 128, 32>}, {transform_indices = @transform_1, window_bounds = array<i64: 16, 8>}, {pipeline_mode = #tpu.pipeline_mode<synchronous>, transform_indices = @transform_2, window_bounds = array<i64: 32, 128>}, {pipeline_mode = #tpu.pipeline_mode<synchronous>, transform_indices = @transform_3, window_bounds = array<i64: 128, 640>}, {pipeline_mode = #tpu.pipeline_mode<synchronous>, transform_indices = @transform_4, window_bounds = array<i64: 6, 128>}, {pipeline_mode = #tpu.pipeline_mode<synchronous>, transform_indices = @transform_5, window_bounds = array<i64: 128, 128>}, {pipeline_mode = #tpu.pipeline_mode<synchronous>, transform_indices = @transform_6, window_bounds = array<i64: 1, 128>}, {transform_indices = @transform_7, window_bounds = array<i64: 16, 128>}]} {
    %c0 = arith.constant 0 : index
    %c0_0 = arith.constant 0 : index
    %0 = vector.load %arg5[%c0, %c0_0] : memref<6x128xf32, #tpu.memory_space<vmem>>, vector<1x128xf32>
    %c1 = arith.constant 1 : index
    %c0_1 = arith.constant 0 : index
    %1 = vector.load %arg5[%c1, %c0_1] : memref<6x128xf32, #tpu.memory_space<vmem>>, vector<1x128xf32>
    %c2 = arith.constant 2 : index
    %c0_2 = arith.constant 0 : index
    %2 = vector.load %arg5[%c2, %c0_2] : memref<6x128xf32, #tpu.memory_space<vmem>>, vector<1x128xf32>
    %c3 = arith.constant 3 : index
    %c0_3 = arith.constant 0 : index
    %3 = vector.load %arg5[%c3, %c0_3] : memref<6x128xf32, #tpu.memory_space<vmem>>, vector<1x128xf32>
    %c4 = arith.constant 4 : index
    %c0_4 = arith.constant 0 : index
    %4 = vector.load %arg5[%c4, %c0_4] : memref<6x128xf32, #tpu.memory_space<vmem>>, vector<1x128xf32>
    %c5 = arith.constant 5 : index
    %c0_5 = arith.constant 0 : index
    %5 = vector.load %arg5[%c5, %c0_5] : memref<6x128xf32, #tpu.memory_space<vmem>>, vector<1x128xf32>
    %c0_6 = arith.constant 0 : index
    %c0_7 = arith.constant 0 : index
    %6 = vector.load %arg3[%c0_6, %c0_7] : memref<32x128xbf16, #tpu.memory_space<vmem>>, vector<32x128xbf16>
    %c0_8 = arith.constant 0 : index
    %c0_9 = arith.constant 0 : index
    %7 = vector.load %arg4[%c0_8, %c0_9] : memref<128x640xbf16, #tpu.memory_space<vmem>>, vector<128x128xbf16>
    %c0_10 = arith.constant 0 : index
    %c128 = arith.constant 128 : index
    %8 = vector.load %arg4[%c0_10, %c128] : memref<128x640xbf16, #tpu.memory_space<vmem>>, vector<128x256xbf16>
    %c0_11 = arith.constant 0 : index
    %c384 = arith.constant 384 : index
    %9 = vector.load %arg4[%c0_11, %c384] : memref<128x640xbf16, #tpu.memory_space<vmem>>, vector<128x128xbf16>
    %c0_12 = arith.constant 0 : index
    %c512 = arith.constant 512 : index
    %10 = vector.load %arg4[%c0_12, %c512] : memref<128x640xbf16, #tpu.memory_space<vmem>>, vector<128x128xbf16>
    %c0_13 = arith.constant 0 : index
    %c0_14 = arith.constant 0 : index
    %11 = vector.load %arg1[%c0_13, %c0_14] : memref<128x32xbf16, #tpu.memory_space<vmem>>, vector<128x32xbf16>
    %cst = arith.constant dense<0.000000e+00> : vector<128x128xf32>
    %12 = tpu.matmul %11, %6, %cst {dimension_numbers = #tpu.dot_dimension_numbers<[1], [0], [0], [1], [0, 0, 1, 1], [], []>} : vector<128x32xbf16>, vector<32x128xbf16>, vector<128x128xf32> -> vector<128x128xf32>
    %13 = vector.broadcast %0 : vector<1x128xf32> to vector<128x128xf32>
    %14 = arith.addf %12, %13 : vector<128x128xf32>
    %15 = math.tanh %14 : vector<128x128xf32>
    %16 = arith.truncf %15 : vector<128x128xf32> to vector<128x128xbf16>
    %cst_15 = arith.constant dense<0.000000e+00> : vector<128x256xf32>
    %17 = tpu.matmul %16, %8, %cst_15 {dimension_numbers = #tpu.dot_dimension_numbers<[1], [0], [0], [1], [0, 0, 1, 1], [], []>} : vector<128x128xbf16>, vector<128x256xbf16>, vector<128x256xf32> -> vector<128x256xf32>
    %18 = vector.extract_strided_slice %17 {offsets = [0, 0], sizes = [128, 128], strides = [1, 1]} : vector<128x256xf32> to vector<128x128xf32>
    %19 = vector.broadcast %2 : vector<1x128xf32> to vector<128x128xf32>
    %20 = arith.addf %18, %19 : vector<128x128xf32>
    %21 = vector.shape_cast %20 : vector<128x128xf32> to vector<16x8x128xf32>
    %22 = vector.extract_strided_slice %17 {offsets = [0, 128], sizes = [128, 128], strides = [1, 1]} : vector<128x256xf32> to vector<128x128xf32>
    %23 = vector.broadcast %3 : vector<1x128xf32> to vector<128x128xf32>
    %24 = arith.addf %22, %23 : vector<128x128xf32>
    %25 = vector.shape_cast %24 : vector<128x128xf32> to vector<16x8x128xf32>
    %26 = vector.shape_cast %15 : vector<128x128xf32> to vector<16x8x128xf32>
    %27 = vector.extract_strided_slice %26 {offsets = [0, 0, 0], sizes = [16, 1, 128], strides = [1, 1, 1]} : vector<16x8x128xf32> to vector<16x1x128xf32>
    %28 = vector.shape_cast %27 : vector<16x1x128xf32> to vector<16x128xf32>
    %29 = arith.truncf %28 : vector<16x128xf32> to vector<16x128xbf16>
    %cst_16 = arith.constant dense<0.000000e+00> : vector<16x128xf32>
    %30 = tpu.matmul %29, %7, %cst_16 {dimension_numbers = #tpu.dot_dimension_numbers<[1], [0], [0], [1], [0, 0, 1, 1], [], []>} : vector<16x128xbf16>, vector<128x128xbf16>, vector<16x128xf32> -> vector<16x128xf32>
    %31 = vector.broadcast %1 : vector<1x128xf32> to vector<16x128xf32>
    %32 = arith.addf %30, %31 : vector<16x128xf32>
    %c0_17 = arith.constant 0 : index
    %c0_18 = arith.constant 0 : index
    %33 = vector.load %arg2[%c0_17, %c0_18] : memref<16x8xf32, #tpu.memory_space<vmem>>, vector<16x8xf32>
    %34 = vector.shape_cast %32 : vector<16x128xf32> to vector<16x1x128xf32>
    %35 = vector.broadcast %34 : vector<16x1x128xf32> to vector<16x8x128xf32>
    %36 = arith.mulf %35, %21 : vector<16x8x128xf32>
    %37 = vector.extract_strided_slice %36 {offsets = [0, 0, 0], sizes = [16, 8, 64], strides = [1, 1, 1]} : vector<16x8x128xf32> to vector<16x8x64xf32>
    %cst_19 = arith.constant dense<0.000000e+00> : vector<16x8xf32>
    %38 = vector.multi_reduction <add>, %37, %cst_19 [2] : vector<16x8x64xf32> to vector<16x8xf32>
    %cst_20 = arith.constant 1.250000e-01 : f32
    %39 = vector.broadcast %cst_20 : f32 to vector<16x8xf32>
    %40 = arith.mulf %38, %39 : vector<16x8xf32>
    %41 = arith.addf %40, %33 : vector<16x8xf32>
    %42 = vector.extract_strided_slice %36 {offsets = [0, 0, 64], sizes = [16, 8, 64], strides = [1, 1, 1]} : vector<16x8x128xf32> to vector<16x8x64xf32>
    %cst_21 = arith.constant dense<0.000000e+00> : vector<16x8xf32>
    %43 = vector.multi_reduction <add>, %42, %cst_21 [2] : vector<16x8x64xf32> to vector<16x8xf32>
    %cst_22 = arith.constant 1.250000e-01 : f32
    %44 = vector.broadcast %cst_22 : f32 to vector<16x8xf32>
    %45 = arith.mulf %43, %44 : vector<16x8xf32>
    %46 = arith.addf %45, %33 : vector<16x8xf32>
    %cst_23 = arith.constant dense<0xFF800000> : vector<16xf32>
    %47 = vector.multi_reduction <maximumf>, %41, %cst_23 [1] : vector<16x8xf32> to vector<16xf32>
    %48 = vector.shape_cast %47 : vector<16xf32> to vector<16x1xf32>
    %49 = vector.broadcast %48 : vector<16x1xf32> to vector<16x8xf32>
    %50 = arith.subf %41, %49 : vector<16x8xf32>
    %51 = math.exp %50 : vector<16x8xf32>
    %cst_24 = arith.constant dense<0.000000e+00> : vector<16xf32>
    %52 = vector.multi_reduction <add>, %51, %cst_24 [1] : vector<16x8xf32> to vector<16xf32>
    %53 = vector.shape_cast %52 : vector<16xf32> to vector<16x1xf32>
    %54 = tpu.reciprocal %53 {approx = true} : vector<16x1xf32> -> vector<16x1xf32>
    %55 = vector.broadcast %54 : vector<16x1xf32> to vector<16x8xf32>
    %56 = arith.mulf %51, %55 : vector<16x8xf32>
    %cst_25 = arith.constant dense<0xFF800000> : vector<16xf32>
    %57 = vector.multi_reduction <maximumf>, %46, %cst_25 [1] : vector<16x8xf32> to vector<16xf32>
    %58 = vector.shape_cast %57 : vector<16xf32> to vector<16x1xf32>
    %59 = vector.broadcast %58 : vector<16x1xf32> to vector<16x8xf32>
    %60 = arith.subf %46, %59 : vector<16x8xf32>
    %61 = math.exp %60 : vector<16x8xf32>
    %cst_26 = arith.constant dense<0.000000e+00> : vector<16xf32>
    %62 = vector.multi_reduction <add>, %61, %cst_26 [1] : vector<16x8xf32> to vector<16xf32>
    %63 = vector.shape_cast %62 : vector<16xf32> to vector<16x1xf32>
    %64 = tpu.reciprocal %63 {approx = true} : vector<16x1xf32> -> vector<16x1xf32>
    %65 = vector.broadcast %64 : vector<16x1xf32> to vector<16x8xf32>
    %66 = arith.mulf %61, %65 : vector<16x8xf32>
    %67 = vector.shape_cast %56 : vector<16x8xf32> to vector<16x8x1xf32>
    %68 = vector.extract_strided_slice %25 {offsets = [0, 0, 0], sizes = [16, 8, 64], strides = [1, 1, 1]} : vector<16x8x128xf32> to vector<16x8x64xf32>
    %69 = vector.broadcast %67 : vector<16x8x1xf32> to vector<16x8x64xf32>
    %70 = arith.mulf %69, %68 : vector<16x8x64xf32>
    %cst_27 = arith.constant dense<0.000000e+00> : vector<16x64xf32>
    %71 = vector.multi_reduction <add>, %70, %cst_27 [1] : vector<16x8x64xf32> to vector<16x64xf32>
    %72 = vector.shape_cast %66 : vector<16x8xf32> to vector<16x8x1xf32>
    %73 = vector.extract_strided_slice %25 {offsets = [0, 0, 64], sizes = [16, 8, 64], strides = [1, 1, 1]} : vector<16x8x128xf32> to vector<16x8x64xf32>
    %74 = vector.broadcast %72 : vector<16x8x1xf32> to vector<16x8x64xf32>
    %75 = arith.mulf %74, %73 : vector<16x8x64xf32>
    %cst_28 = arith.constant dense<0.000000e+00> : vector<16x64xf32>
    %76 = vector.multi_reduction <add>, %75, %cst_28 [1] : vector<16x8x64xf32> to vector<16x64xf32>
    %77 = arith.truncf %71 : vector<16x64xf32> to vector<16x64xbf16>
    %78 = vector.extract_strided_slice %9 {offsets = [0, 0], sizes = [64, 128], strides = [1, 1]} : vector<128x128xbf16> to vector<64x128xbf16>
    %cst_29 = arith.constant dense<0.000000e+00> : vector<16x128xf32>
    %79 = tpu.matmul %77, %78, %cst_29 {dimension_numbers = #tpu.dot_dimension_numbers<[1], [0], [0], [1], [0, 0, 1, 1], [], []>} : vector<16x64xbf16>, vector<64x128xbf16>, vector<16x128xf32> -> vector<16x128xf32>
    %80 = arith.truncf %76 : vector<16x64xf32> to vector<16x64xbf16>
    %81 = vector.extract_strided_slice %9 {offsets = [64, 0], sizes = [64, 128], strides = [1, 1]} : vector<128x128xbf16> to vector<64x128xbf16>
    %cst_30 = arith.constant dense<0.000000e+00> : vector<16x128xf32>
    %82 = tpu.matmul %80, %81, %cst_30 {dimension_numbers = #tpu.dot_dimension_numbers<[1], [0], [0], [1], [0, 0, 1, 1], [], []>} : vector<16x64xbf16>, vector<64x128xbf16>, vector<16x128xf32> -> vector<16x128xf32>
    %83 = arith.addf %79, %82 : vector<16x128xf32>
    %84 = vector.broadcast %4 : vector<1x128xf32> to vector<16x128xf32>
    %85 = arith.addf %83, %84 : vector<16x128xf32>
    %86 = arith.truncf %85 : vector<16x128xf32> to vector<16x128xbf16>
    %cst_31 = arith.constant dense<0.000000e+00> : vector<16x128xf32>
    %87 = tpu.matmul %86, %10, %cst_31 {dimension_numbers = #tpu.dot_dimension_numbers<[1], [0], [0], [1], [0, 0, 1, 1], [], []>} : vector<16x128xbf16>, vector<128x128xbf16>, vector<16x128xf32> -> vector<16x128xf32>
    %88 = vector.broadcast %5 : vector<1x128xf32> to vector<16x128xf32>
    %89 = arith.addf %87, %88 : vector<16x128xf32>
    %90 = math.tanh %89 : vector<16x128xf32>
    %91 = arith.truncf %90 : vector<16x128xf32> to vector<16x128xbf16>
    %c0_32 = arith.constant 0 : index
    %c0_33 = arith.constant 0 : index
    %92 = vector.load %arg6[%c0_32, %c0_33] : memref<128x128xbf16, #tpu.memory_space<vmem>>, vector<128x128xbf16>
    %cst_34 = arith.constant dense<0.000000e+00> : vector<16x128xf32>
    %93 = tpu.matmul %91, %92, %cst_34 {dimension_numbers = #tpu.dot_dimension_numbers<[1], [0], [0], [1], [0, 0, 1, 1], [], []>} : vector<16x128xbf16>, vector<128x128xbf16>, vector<16x128xf32> -> vector<16x128xf32>
    %c0_35 = arith.constant 0 : index
    %c0_36 = arith.constant 0 : index
    %94 = vector.load %arg7[%c0_35, %c0_36] : memref<1x128xf32, #tpu.memory_space<vmem>>, vector<1x128xf32>
    %95 = vector.broadcast %94 : vector<1x128xf32> to vector<16x128xf32>
    %96 = arith.addf %93, %95 : vector<16x128xf32>
    %c0_37 = arith.constant 0 : index
    %c0_38 = arith.constant 0 : index
    %97 = vector.load %arg8[%c0_37, %c0_38] : memref<16x128xf32, #tpu.memory_space<vmem>>, vector<16x128xf32>
    tpu.vector_store %arg8[%c0_37, %c0_38], %96 {strides = array<i32>} : memref<16x128xf32, #tpu.memory_space<vmem>>, vector<16x128xf32>,
    return
  }
  func.func @transform_0(%arg0: i32) -> (i32, i32) {
    %c0_i32 = arith.constant 0 : i32
    %c0_i32_0 = arith.constant 0 : i32
    return %arg0, %c0_i32 : i32, i32
  }
  func.func @transform_1(%arg0: i32) -> (i32, i32) {
    %c0_i32 = arith.constant 0 : i32
    %c0_i32_0 = arith.constant 0 : i32
    return %arg0, %c0_i32 : i32, i32
  }
  func.func @transform_2(%arg0: i32) -> (i32, i32) {
    %c0_i32 = arith.constant 0 : i32
    %c0_i32_0 = arith.constant 0 : i32
    %c0_i32_1 = arith.constant 0 : i32
    return %c0_i32, %c0_i32_0 : i32, i32
  }
  func.func @transform_3(%arg0: i32) -> (i32, i32) {
    %c0_i32 = arith.constant 0 : i32
    %c0_i32_0 = arith.constant 0 : i32
    %c0_i32_1 = arith.constant 0 : i32
    return %c0_i32, %c0_i32_0 : i32, i32
  }
  func.func @transform_4(%arg0: i32) -> (i32, i32) {
    %c0_i32 = arith.constant 0 : i32
    %c0_i32_0 = arith.constant 0 : i32
    %c0_i32_1 = arith.constant 0 : i32
    return %c0_i32, %c0_i32_0 : i32, i32
  }
  func.func @transform_5(%arg0: i32) -> (i32, i32) {
    %c0_i32 = arith.constant 0 : i32
    %c0_i32_0 = arith.constant 0 : i32
    %c0_i32_1 = arith.constant 0 : i32
    return %c0_i32, %c0_i32_0 : i32, i32
  }
  func.func @transform_6(%arg0: i32) -> (i32, i32) {
    %c0_i32 = arith.constant 0 : i32
    %c0_i32_0 = arith.constant 0 : i32
    %c0_i32_1 = arith.constant 0 : i32
    return %c0_i32, %c0_i32_0 : i32, i32
  }
  func.func @transform_7(%arg0: i32) -> (i32, i32) {
    %c0_i32 = arith.constant 0 : i32
    %c0_i32_0 = arith.constant 0 : i32
    return %arg0, %c0_i32 : i32, i32
  }
}

</mosaic_0001>

<llo_original>
// kernel: _lambda_.1
$region0: #{_lambda_.1}
  #allocation0 [shape = 'u32[]', space=smem, size = 0x4, offset = 0x4, fixed_abs, tag = 'smem constant byte address 0x4 - core index']
  #allocation1 [shape = 'u32[144,128]{1,0:T(1,128)}', space=vmem, size = 0x12000, scoped, tag = 'internal scratch']
  %s0 = inlined_call_operand.hbm [shape: bf16[128,32], index: 0, kind: input, shape index: {}]
  %s1 = inlined_call_operand.hbm [shape: f32[16,8], index: 1, kind: input, shape index: {}]
  %s2 = inlined_call_operand.hbm [shape: bf16[32,128], index: 2, kind: input, shape index: {}]
  %s3 = inlined_call_operand.hbm [shape: bf16[128,640], index: 3, kind: input, shape index: {}]
  %s4 = inlined_call_operand.hbm [shape: f32[6,128], index: 4, kind: input, shape index: {}]
  %s5 = inlined_call_operand.hbm [shape: bf16[128,128], index: 5, kind: input, shape index: {}]
  %s6 = inlined_call_operand.hbm [shape: f32[1,128], index: 6, kind: input, shape index: {}]
  %s7 = inlined_call_operand.hbm [shape: f32[16,128], index: 7, kind: output, shape index: {}]
  %s8 = sld [smem:[#allocation0]]
  $region66: #{_lambda_.1} parent=0
    _
  %s10 = ssub.s32 1, %s8
  %s11 = scalar_select 0, %s10, %s8
  $region1: #{_lambda_.1} parent=0
    #allocation2 [shape = 'u8[32768]{0}', space=vmem, size = 0x8000, scoped, tag = 'input window, operand 0, single buffered']
    #allocation3 [shape = 's32[1]{0}', space=sflag, size = 0x4, scoped, tag = 'scoped memory for _lambda_.1']
    #allocation4 [shape = 's32[1]{0}', space=sflag, size = 0x4, scoped, tag = 'scoped memory for _lambda_.1']
    #allocation5 [shape = 'u8[8192]{0}', space=vmem, size = 0x2000, scoped, tag = 'input window, operand 1, single buffered']
    #allocation6 [shape = 's32[1]{0}', space=sflag, size = 0x4, scoped, tag = 'scoped memory for _lambda_.1']
    #allocation7 [shape = 'u8[8192]{0}', space=vmem, size = 0x2000, scoped, tag = 'input window, operand 2, single buffered']
    #allocation8 [shape = 'u8[163840]{0}', space=vmem, size = 0x28000, scoped, tag = 'input window, operand 3, single buffered']
    #allocation9 [shape = 's32[1]{0}', space=sflag, size = 0x4, scoped, tag = 'scoped memory for _lambda_.1']
    #allocation10 [shape = 'u8[4096]{0}', space=vmem, size = 0x1000, scoped, tag = 'input window, operand 4, single buffered']
    #allocation11 [shape = 'u8[32768]{0}', space=vmem, size = 0x8000, scoped, tag = 'input window, operand 5, single buffered']
    #allocation12 [shape = 's32[1]{0}', space=sflag, size = 0x4, scoped, tag = 'scoped memory for _lambda_.1']
    #allocation13 [shape = 'u8[512]{0}', space=vmem, size = 0x400, scoped, tag = 'input window, operand 6, single buffered']
    #allocation14 [shape = 'u8[8192]{0}', space=vmem, size = 0x2000, scoped, tag = 'output window, operand 0, single buffered']
    %12 = vsyncpa [#allocation3], 0
    %13 = vsyncpa [#allocation6], 0
    %14 = vsyncpa [#allocation9], 0
    %15 = vsyncpa [#allocation12], 0
    %16 = vsyncpa [#allocation4], 0
    // Predicated region
    $region2: #{_lambda_.1} parent=1 // pred_check
      _
    $region3: #{_lambda_.1} parent=1 // pred_check_branch
      %18 = sbr.rel (0) target = $region5
    $region4: #{_lambda_.1} parent=1 // pred_region
      %s20 = ssub.s32 1024, 1024
      %21 = vsyncadd [#allocation3], %s20
      %s22 = sshll.u32 [#allocation2], 4
      %s23 = int_to_ptr.vmem [resolvable:$true] %s22
      %28 = dma.hbm_to_vmem [thread:$0]  %s0, 1024, %s23, [#allocation3], 64, 64, 4
    $region5: #{_lambda_.1} parent=1 // pred_fallthru
      _
    // Predicated region
    $region6: #{_lambda_.1} parent=1 // pred_check
      _
    $region7: #{_lambda_.1} parent=1 // pred_check_branch
      %30 = sbr.rel (0) target = $region9
    $region8: #{_lambda_.1} parent=1 // pred_region
      %s32 = ssub.s32 256, 256
      %33 = vsyncadd [#allocation6], %s32
      %s34 = sshll.u32 [#allocation5], 4
      %s35 = int_to_ptr.vmem [resolvable:$true] %s34
      %40 = dma.hbm_to_vmem [thread:$0]  %s1, 256, %s35, [#allocation6], 128, 128, 8
    $region9: #{_lambda_.1} parent=1 // pred_fallthru
      _
    // Predicated region
    $region10: #{_lambda_.1} parent=1 // pred_check
      _
    $region11: #{_lambda_.1} parent=1 // pred_check_branch
      %42 = sbr.rel (0) target = $region13
    $region12: #{_lambda_.1} parent=1 // pred_region
      %s44 = ssub.s32 256, 256
      %45 = vsyncadd [#allocation6], %s44
      %s46 = sshll.u32 [#allocation7], 4
      %s47 = int_to_ptr.vmem [resolvable:$true] %s46
      %52 = dma.hbm_to_vmem [thread:$0]  %s2, 256, %s47, [#allocation6], 64, 64, 4
    $region13: #{_lambda_.1} parent=1 // pred_fallthru
      _
    // Predicated region
    $region14: #{_lambda_.1} parent=1 // pred_check
      _
    $region15: #{_lambda_.1} parent=1 // pred_check_branch
      %54 = sbr.rel (0) target = $region17
    $region16: #{_lambda_.1} parent=1 // pred_region
      %s56 = ssub.s32 5120, 5120
      %57 = vsyncadd [#allocation9], %s56
      %s58 = sshll.u32 [#allocation8], 4
      %s59 = int_to_ptr.vmem [resolvable:$true] %s58
      %64 = dma.hbm_to_vmem [thread:$0]  %s3, 5120, %s59, [#allocation9], 320, 320, 20
    $region17: #{_lambda_.1} parent=1 // pred_fallthru
      _
    // Predicated region
    $region18: #{_lambda_.1} parent=1 // pred_check
      _
    $region19: #{_lambda_.1} parent=1 // pred_check_branch
      %66 = sbr.rel (0) target = $region21
    $region20: #{_lambda_.1} parent=1 // pred_region
      %s68 = ssub.s32 128, 128
      %69 = vsyncadd [#allocation9], %s68
      %s71 = sshll.u32 [#allocation10], 4
      %s72 = int_to_ptr.vmem [resolvable:$true] %s71
      %74 = dma.hbm_to_vmem [thread:$0]  %s4, 128, %s72, [#allocation9]
    $region21: #{_lambda_.1} parent=1 // pred_fallthru
      _
    // Predicated region
    $region22: #{_lambda_.1} parent=1 // pred_check
      _
    $region23: #{_lambda_.1} parent=1 // pred_check_branch
      %76 = sbr.rel (0) target = $region25
    $region24: #{_lambda_.1} parent=1 // pred_region
      %s78 = ssub.s32 1024, 1024
      %79 = vsyncadd [#allocation12], %s78
      %s80 = sshll.u32 [#allocation11], 4
      %s81 = int_to_ptr.vmem [resolvable:$true] %s80
      %86 = dma.hbm_to_vmem [thread:$0]  %s5, 1024, %s81, [#allocation12], 64, 64, 4
    $region25: #{_lambda_.1} parent=1 // pred_fallthru
      _
    // Predicated region
    $region26: #{_lambda_.1} parent=1 // pred_check
      _
    $region27: #{_lambda_.1} parent=1 // pred_check_branch
      %88 = sbr.rel (0) target = $region29
    $region28: #{_lambda_.1} parent=1 // pred_region
      %s90 = ssub.s32 16, 16
      %91 = vsyncadd [#allocation12], %s90
      %s93 = sshll.u32 [#allocation13], 4
      %s94 = int_to_ptr.vmem [resolvable:$true] %s93
      %96 = dma.hbm_to_vmem [thread:$0]  %s6, 16, %s94, [#allocation12]
    $region29: #{_lambda_.1} parent=1 // pred_fallthru
      _
    // Predicated region
    $region30: #{_lambda_.1} parent=1 // pred_check
      _
    $region31: #{_lambda_.1} parent=1 // pred_check_branch
      %98 = sbr.rel (0) target = $region33
    $region32: #{_lambda_.1} parent=1 // pred_region
      %99 = dma.done [#allocation3], 1024
    $region33: #{_lambda_.1} parent=1 // pred_fallthru
      _
    // Predicated region
    $region34: #{_lambda_.1} parent=1 // pred_check
      _
    $region35: #{_lambda_.1} parent=1 // pred_check_branch
      %101 = sbr.rel (0) target = $region37
    $region36: #{_lambda_.1} parent=1 // pred_region
      %102 = dma.done [#allocation6], 256
    $region37: #{_lambda_.1} parent=1 // pred_fallthru
      _
    // Predicated region
    $region38: #{_lambda_.1} parent=1 // pred_check
      _
    $region39: #{_lambda_.1} parent=1 // pred_check_branch
      %104 = sbr.rel (0) target = $region41
    $region40: #{_lambda_.1} parent=1 // pred_region
      %105 = dma.done [#allocation6], 256
    $region41: #{_lambda_.1} parent=1 // pred_fallthru
      _
    // Predicated region
    $region42: #{_lambda_.1} parent=1 // pred_check
      _
    $region43: #{_lambda_.1} parent=1 // pred_check_branch
      %107 = sbr.rel (0) target = $region45
    $region44: #{_lambda_.1} parent=1 // pred_region
      %108 = dma.done [#allocation9], 5120
    $region45: #{_lambda_.1} parent=1 // pred_fallthru
      _
    // Predicated region
    $region46: #{_lambda_.1} parent=1 // pred_check
      _
    $region47: #{_lambda_.1} parent=1 // pred_check_branch
      %110 = sbr.rel (0) target = $region49
    $region48: #{_lambda_.1} parent=1 // pred_region
      %111 = dma.done [#allocation9], 128
    $region49: #{_lambda_.1} parent=1 // pred_fallthru
      _
    // Predicated region
    $region50: #{_lambda_.1} parent=1 // pred_check
      _
    $region51: #{_lambda_.1} parent=1 // pred_check_branch
      %113 = sbr.rel (0) target = $region53
    $region52: #{_lambda_.1} parent=1 // pred_region
      %114 = dma.done [#allocation12], 1024
    $region53: #{_lambda_.1} parent=1 // pred_fallthru
      _
    // Predicated region
    $region54: #{_lambda_.1} parent=1 // pred_check
      _
    $region55: #{_lambda_.1} parent=1 // pred_check_branch
      %116 = sbr.rel (0) target = $region57
    $region56: #{_lambda_.1} parent=1 // pred_region
      %117 = dma.done [#allocation12], 16
    $region57: #{_lambda_.1} parent=1 // pred_fallthru
      _
    %v119 = vld [vmem:[#allocation10] sm:$0x1]
    %v120 = vld [vmem:[#allocation10 + $0x1] sm:$0x1]
    %v121 = vld [vmem:[#allocation10 + $0x2] sm:$0x1]
    %v122 = vld [vmem:[#allocation10 + $0x3] sm:$0x1]
    %v123 = vld [vmem:[#allocation10 + $0x4] sm:$0x1]
    %v124 = vld [vmem:[#allocation10 + $0x5] sm:$0x1]
    %v125 = vld [vmem:[#allocation7] sm:$0xf]
    %v126 = vld [vmem:[#allocation7 + $0x4] sm:$0xf]
    %v127 = vld [vmem:[#allocation7 + $0x8] sm:$0xf]
    %v128 = vld [vmem:[#allocation7 + $0xc] sm:$0xf]
    %v129 = vld [vmem:[#allocation8] sm:$0xf]
    %v130 = vld [vmem:[#allocation8 + $0x14] sm:$0xf]
    %v131 = vld [vmem:[#allocation8 + $0x28] sm:$0xf]
    %v132 = vld [vmem:[#allocation8 + $0x3c] sm:$0xf]
    %v133 = vld [vmem:[#allocation8 + $0x50] sm:$0xf]
    %v134 = vld [vmem:[#allocation8 + $0x64] sm:$0xf]
    %v135 = vld [vmem:[#allocation8 + $0x78] sm:$0xf]
    %v136 = vld [vmem:[#allocation8 + $0x8c] sm:$0xf]
    %v137 = vld [vmem:[#allocation8 + $0xa0] sm:$0xf]
    %v138 = vld [vmem:[#allocation8 + $0xb4] sm:$0xf]
    %v139 = vld [vmem:[#allocation8 + $0xc8] sm:$0xf]
    %v140 = vld [vmem:[#allocation8 + $0xdc] sm:$0xf]
    %v141 = vld [vmem:[#allocation8 + $0xf0] sm:$0xf]
    %v142 = vld [vmem:[#allocation8 + $0x104] sm:$0xf]
    %v143 = vld [vmem:[#allocation8 + $0x118] sm:$0xf]
    %v144 = vld [vmem:[#allocation8 + $0x12c] sm:$0xf]
    %v145 = vld [vmem:[#allocation8 + $0x4] sm:$0xff]
    %v146 = vld [vmem:[#allocation8 + $0x18] sm:$0xff]
    %v147 = vld [vmem:[#allocation8 + $0x2c] sm:$0xff]
    %v148 = vld [vmem:[#allocation8 + $0x40] sm:$0xff]
    %v149 = vld [vmem:[#allocation8 + $0x54] sm:$0xff]
    %v150 = vld [vmem:[#allocation8 + $0x68] sm:$0xff]
    %v151 = vld [vmem:[#allocation8 + $0x7c] sm:$0xff]
    %v152 = vld [vmem:[#allocation8 + $0x90] sm:$0xff]
    %v153 = vld [vmem:[#allocation8 + $0xa4] sm:$0xff]
    %v154 = vld [vmem:[#allocation8 + $0xb8] sm:$0xff]
    %v155 = vld [vmem:[#allocation8 + $0xcc] sm:$0xff]
    %v156 = vld [vmem:[#allocation8 + $0xe0] sm:$0xff]
    %v157 = vld [vmem:[#allocation8 + $0xf4] sm:$0xff]
    %v158 = vld [vmem:[#allocation8 + $0x108] sm:$0xff]
    %v159 = vld [vmem:[#allocation8 + $0x11c] sm:$0xff]
    %v160 = vld [vmem:[#allocation8 + $0x130] sm:$0xff]
    %v161 = vld [vmem:[#allocation8 + $0xc] sm:$0xf]
    %v162 = vld [vmem:[#allocation8 + $0x20] sm:$0xf]
    %v163 = vld [vmem:[#allocation8 + $0x34] sm:$0xf]
    %v164 = vld [vmem:[#allocation8 + $0x48] sm:$0xf]
    %v165 = vld [vmem:[#allocation8 + $0x5c] sm:$0xf]
    %v166 = vld [vmem:[#allocation8 + $0x70] sm:$0xf]
    %v167 = vld [vmem:[#allocation8 + $0x84] sm:$0xf]
    %v168 = vld [vmem:[#allocation8 + $0x98] sm:$0xf]
    %v169 = vld [vmem:[#allocation8 + $0xac] sm:$0xf]
    %v170 = vld [vmem:[#allocation8 + $0xc0] sm:$0xf]
    %v171 = vld [vmem:[#allocation8 + $0xd4] sm:$0xf]
    %v172 = vld [vmem:[#allocation8 + $0xe8] sm:$0xf]
    %v173 = vld [vmem:[#allocation8 + $0xfc] sm:$0xf]
    %v174 = vld [vmem:[#allocation8 + $0x110] sm:$0xf]
    %v175 = vld [vmem:[#allocation8 + $0x124] sm:$0xf]
    %v176 = vld [vmem:[#allocation8 + $0x138] sm:$0xf]
    %v177 = vld [vmem:[#allocation8 + $0x10] sm:$0xf]
    %v178 = vld [vmem:[#allocation8 + $0x24] sm:$0xf]
    %v179 = vld [vmem:[#allocation8 + $0x38] sm:$0xf]
    %v180 = vld [vmem:[#allocation8 + $0x4c] sm:$0xf]
    %v181 = vld [vmem:[#allocation8 + $0x60] sm:$0xf]
    %v182 = vld [vmem:[#allocation8 + $0x74] sm:$0xf]
    %v183 = vld [vmem:[#allocation8 + $0x88] sm:$0xf]
    %v184 = vld [vmem:[#allocation8 + $0x9c] sm:$0xf]
    %v185 = vld [vmem:[#allocation8 + $0xb0] sm:$0xf]
    %v186 = vld [vmem:[#allocation8 + $0xc4] sm:$0xf]
    %v187 = vld [vmem:[#allocation8 + $0xd8] sm:$0xf]
    %v188 = vld [vmem:[#allocation8 + $0xec] sm:$0xf]
    %v189 = vld [vmem:[#allocation8 + $0x100] sm:$0xf]
    %v190 = vld [vmem:[#allocation8 + $0x114] sm:$0xf]
    %v191 = vld [vmem:[#allocation8 + $0x128] sm:$0xf]
    %v192 = vld [vmem:[#allocation8 + $0x13c] sm:$0xf]
    %v193 = vld [vmem:[#allocation2] sm:$0xf]
    %v194 = vld [vmem:[#allocation2 + $0x4] sm:$0xf]
    %v195 = vld [vmem:[#allocation2 + $0x8] sm:$0xf]
    %v196 = vld [vmem:[#allocation2 + $0xc] sm:$0xf]
    %v197 = vld [vmem:[#allocation2 + $0x10] sm:$0xf]
    %v198 = vld [vmem:[#allocation2 + $0x14] sm:$0xf]
    %v199 = vld [vmem:[#allocation2 + $0x18] sm:$0xf]
    %v200 = vld [vmem:[#allocation2 + $0x1c] sm:$0xf]
    %v201 = vld [vmem:[#allocation2 + $0x20] sm:$0xf]
    %v202 = vld [vmem:[#allocation2 + $0x24] sm:$0xf]
    %v203 = vld [vmem:[#allocation2 + $0x28] sm:$0xf]
    %v204 = vld [vmem:[#allocation2 + $0x2c] sm:$0xf]
    %v205 = vld [vmem:[#allocation2 + $0x30] sm:$0xf]
    %v206 = vld [vmem:[#allocation2 + $0x34] sm:$0xf]
    %v207 = vld [vmem:[#allocation2 + $0x38] sm:$0xf]
    %v208 = vld [vmem:[#allocation2 + $0x3c] sm:$0xf]
    %v209 = vlaneseq
    %v210 = vshrl.u32 %v209, 7
    %v211 = vsub.s32 0, %v210
    %v212 = vrot.slane %v119, %v211
    %v229 = vunpack.c.l.b16 %v193
    %v230 = vunpack.c.l.b16 %v194
    %v231 = vunpack.c.l.b16 %v195
    %v232 = vunpack.c.l.b16 %v196
    %v233 = vunpack.c.l.b16 %v197
    %v234 = vunpack.c.l.b16 %v198
    %v235 = vunpack.c.l.b16 %v199
    %v236 = vunpack.c.l.b16 %v200
    %v237 = vunpack.c.l.b16 %v201
    %v238 = vunpack.c.l.b16 %v202
    %v239 = vunpack.c.l.b16 %v203
    %v240 = vunpack.c.l.b16 %v204
    %v241 = vunpack.c.l.b16 %v205
    %v242 = vunpack.c.l.b16 %v206
    %v243 = vunpack.c.l.b16 %v207
    %v244 = vunpack.c.l.b16 %v208
    %v245 = vpack.c.b16 %v230, %v229
    %v246 = vpack.c.b16 %v232, %v231
    %v247 = vpack.c.b16 %v234, %v233
    %v248 = vpack.c.b16 %v236, %v235
    %v249 = vpack.c.b16 %v238, %v237
    %v250 = vpack.c.b16 %v240, %v239
    %v251 = vpack.c.b16 %v242, %v241
    %v252 = vpack.c.b16 %v244, %v243
    %v257 = vunpack.c.l.b16 %v125
    %v258 = vunpack.c.l.b16 %v126
    %v259 = vunpack.c.l.b16 %v127
    %v260 = vunpack.c.l.b16 %v128
    %v261 = vpack.c.b16 %v258, %v257
    %v262 = vpack.c.b16 %v260, %v259
    %vm265 = vcmask 261120
    %v267 = vsel %vm265, %v245, 0
    %v270 = vsel %vm265, %v246, 0
    %v273 = vsel %vm265, %v247, 0
    %v276 = vsel %vm265, %v248, 0
    %v279 = vsel %vm265, %v249, 0
    %v282 = vsel %vm265, %v250, 0
    %v285 = vsel %vm265, %v251, 0
    %v288 = vsel %vm265, %v252, 0
    %290 = vmatprep.subr.bf16.mxu0 0
    %291 = vmatpush1.bf16.msra.mxu0 %v261
    %292 = vmatprep.subr.bf16.mxu0 0
    %293 = vmatpush1.bf16.msra.mxu0 %v262
    %294 = vmatprep.subr.bf16.mxu0 0
    %295 = vmatpush1.bf16.msra.mxu0 0
    %296 = vmatprep.subr.bf16.mxu0 0
    %297 = vmatpush1.bf16.msra.mxu0 0
    %298 = vmatprep.subr.bf16.mxu0 0
    %299 = vmatpush1.bf16.msra.mxu0 0
    %300 = vmatprep.subr.bf16.mxu0 0
    %301 = vmatpush1.bf16.msra.mxu0 0
    %302 = vmatprep.subr.bf16.mxu0 0
    %303 = vmatpush1.bf16.msra.mxu0 0
    %304 = vmatprep.subr.bf16.mxu0 0
    %305 = vmatpush1.bf16.msra.mxu0 0
    %306 = vmatprep.subr.bf16.mxu0 0
    %307 = vmatpush1.bf16.msra.mxu0 0
    %308 = vmatprep.subr.bf16.mxu0 0
    %309 = vmatpush1.bf16.msra.mxu0 0
    %310 = vmatprep.subr.bf16.mxu0 0
    %311 = vmatpush1.bf16.msra.mxu0 0
    %312 = vmatprep.subr.bf16.mxu0 0
    %313 = vmatpush1.bf16.msra.mxu0 0
    %314 = vmatprep.subr.bf16.mxu0 0
    %315 = vmatpush1.bf16.msra.mxu0 0
    %316 = vmatprep.subr.bf16.mxu0 0
    %317 = vmatpush1.bf16.msra.mxu0 0
    %318 = vmatprep.subr.bf16.mxu0 0
    %319 = vmatpush1.bf16.msra.mxu0 0
    %320 = vmatprep.subr.bf16.mxu0 0
    %321 = vmatpush1.bf16.msra.mxu0 0
    %322 = vmatprep.mubr.bf16.mxu0 0
    %323 = vmatmul.mubr.bf16.gmra.mrb[0].mxu0 %v267
    %v324 = vpop.f32.mrb[0].mxu0
    %v325 = vadd.f32 %v212, %v324
    %v326 = vpop.f32.mrb[0].mxu0
    %v327 = vpop.f32.mrb[0].mxu0
    %v328 = vadd.f32 %v212, %v327
    %v329 = vpop.f32.mrb[0].mxu0
    %330 = vmatprep.mubr.bf16.mxu0 0
    %331 = vmatmul.mubr.bf16.gmra.mrb[0].mxu0 %v270
    %v332 = vpop.f32.mrb[0].mxu0
    %v333 = vadd.f32 %v212, %v332
    %v334 = vpop.f32.mrb[0].mxu0
    %v335 = vpop.f32.mrb[0].mxu0
    %v336 = vadd.f32 %v212, %v335
    %v337 = vpop.f32.mrb[0].mxu0
    %338 = vmatprep.mubr.bf16.mxu0 0
    %339 = vmatmul.mubr.bf16.gmra.mrb[0].mxu0 %v273
    %v340 = vpop.f32.mrb[0].mxu0
    %v341 = vadd.f32 %v212, %v340
    %v342 = vpop.f32.mrb[0].mxu0
    %v343 = vpop.f32.mrb[0].mxu0
    %v344 = vadd.f32 %v212, %v343
    %v345 = vpop.f32.mrb[0].mxu0
    %346 = vmatprep.mubr.bf16.mxu0 0
    %347 = vmatmul.mubr.bf16.gmra.mrb[0].mxu0 %v276
    %v348 = vpop.f32.mrb[0].mxu0
    %v349 = vadd.f32 %v212, %v348
    %v350 = vpop.f32.mrb[0].mxu0
    %v351 = vpop.f32.mrb[0].mxu0
    %v352 = vadd.f32 %v212, %v351
    %v353 = vpop.f32.mrb[0].mxu0
    %354 = vmatprep.mubr.bf16.mxu0 0
    %355 = vmatmul.mubr.bf16.gmra.mrb[0].mxu0 %v279
    %v356 = vpop.f32.mrb[0].mxu0
    %v357 = vadd.f32 %v212, %v356
    %v358 = vpop.f32.mrb[0].mxu0
    %v359 = vpop.f32.mrb[0].mxu0
    %v360 = vadd.f32 %v212, %v359
    %v361 = vpop.f32.mrb[0].mxu0
    %362 = vmatprep.mubr.bf16.mxu0 0
    %363 = vmatmul.mubr.bf16.gmra.mrb[0].mxu0 %v282
    %v364 = vpop.f32.mrb[0].mxu0
    %v365 = vadd.f32 %v212, %v364
    %v366 = vpop.f32.mrb[0].mxu0
    %v367 = vpop.f32.mrb[0].mxu0
    %v368 = vadd.f32 %v212, %v367
    %v369 = vpop.f32.mrb[0].mxu0
    %370 = vmatprep.mubr.bf16.mxu0 0
    %371 = vmatmul.mubr.bf16.gmra.mrb[0].mxu0 %v285
    %v372 = vpop.f32.mrb[0].mxu0
    %v373 = vadd.f32 %v212, %v372
    %v374 = vpop.f32.mrb[0].mxu0
    %v375 = vpop.f32.mrb[0].mxu0
    %v376 = vadd.f32 %v212, %v375
    %v377 = vpop.f32.mrb[0].mxu0
    %378 = vmatprep.mubr.bf16.mxu0 0
    %379 = vmatmul.mubr.bf16.gmra.mrb[0].mxu0 %v288
    %v380 = vpop.f32.mrb[0].mxu0
    %v381 = vadd.f32 %v212, %v380
    %v382 = vpop.f32.mrb[0].mxu0
    %v383 = vpop.f32.mrb[0].mxu0
    %v384 = vadd.f32 %v212, %v383
    %v385 = vpop.f32.mrb[0].mxu0
    %386 = vdwg.mxu0
    %v387 = vtanh.pop %v325
    %v388 = vtanh.pop %v328
    %v389 = vtanh.pop %v333
    %v390 = vtanh.pop %v336
    %v391 = vtanh.pop %v341
    %v392 = vtanh.pop %v344
    %v393 = vtanh.pop %v349
    %v394 = vtanh.pop %v352
    %v395 = vtanh.pop %v357
    %v396 = vtanh.pop %v360
    %v397 = vtanh.pop %v365
    %v398 = vtanh.pop %v368
    %v399 = vtanh.pop %v373
    %v400 = vtanh.pop %v376
    %v401 = vtanh.pop %v381
    %v402 = vtanh.pop %v384
    %v403 = vpack.c.bf16 %v388, %v387
    %v404 = vpack.c.bf16 %v390, %v389
    %v405 = vpack.c.bf16 %v392, %v391
    %v406 = vpack.c.bf16 %v394, %v393
    %v407 = vpack.c.bf16 %v396, %v395
    %v408 = vpack.c.bf16 %v398, %v397
    %v409 = vpack.c.bf16 %v400, %v399
    %v410 = vpack.c.bf16 %v402, %v401
    %v427 = vunpack.c.l.b16 %v145
    %v428 = vunpack.c.h.b16 %v145
    %v429 = vunpack.c.l.b16 %v146
    %v430 = vunpack.c.h.b16 %v146
    %v431 = vunpack.c.l.b16 %v147
    %v432 = vunpack.c.h.b16 %v147
    %v433 = vunpack.c.l.b16 %v148
    %v434 = vunpack.c.h.b16 %v148
    %v435 = vunpack.c.l.b16 %v149
    %v436 = vunpack.c.h.b16 %v149
    %v437 = vunpack.c.l.b16 %v150
    %v438 = vunpack.c.h.b16 %v150
    %v439 = vunpack.c.l.b16 %v151
    %v440 = vunpack.c.h.b16 %v151
    %v441 = vunpack.c.l.b16 %v152
    %v442 = vunpack.c.h.b16 %v152
    %v443 = vunpack.c.l.b16 %v153
    %v444 = vunpack.c.h.b16 %v153
    %v445 = vunpack.c.l.b16 %v154
    %v446 = vunpack.c.h.b16 %v154
    %v447 = vunpack.c.l.b16 %v155
    %v448 = vunpack.c.h.b16 %v155
    %v449 = vunpack.c.l.b16 %v156
    %v450 = vunpack.c.h.b16 %v156
    %v451 = vunpack.c.l.b16 %v157
    %v452 = vunpack.c.h.b16 %v157
    %v453 = vunpack.c.l.b16 %v158
    %v454 = vunpack.c.h.b16 %v158
    %v455 = vunpack.c.l.b16 %v159
    %v456 = vunpack.c.h.b16 %v159
    %v457 = vunpack.c.l.b16 %v160
    %v458 = vunpack.c.h.b16 %v160
    %v459 = vpack.c.b16 %v429, %v427
    %v460 = vpack.c.b16 %v430, %v428
    %v461 = vpack.c.b16 %v433, %v431
    %v462 = vpack.c.b16 %v434, %v432
    %v463 = vpack.c.b16 %v437, %v435
    %v464 = vpack.c.b16 %v438, %v436
    %v465 = vpack.c.b16 %v441, %v439
    %v466 = vpack.c.b16 %v442, %v440
    %v467 = vpack.c.b16 %v445, %v443
    %v468 = vpack.c.b16 %v446, %v444
    %v469 = vpack.c.b16 %v449, %v447
    %v470 = vpack.c.b16 %v450, %v448
    %v471 = vpack.c.b16 %v453, %v451
    %v472 = vpack.c.b16 %v454, %v452
    %v473 = vpack.c.b16 %v457, %v455
    %v474 = vpack.c.b16 %v458, %v456
    %491 = vmatprep.subr.bf16.mxu0 %v460
    %492 = vmatpush1.bf16.msra.mxu0 %v459
    %493 = vmatprep.subr.bf16.mxu0 %v462
    %494 = vmatpush1.bf16.msra.mxu0 %v461
    %495 = vmatprep.subr.bf16.mxu0 %v464
    %496 = vmatpush1.bf16.msra.mxu0 %v463
    %497 = vmatprep.subr.bf16.mxu0 %v466
    %498 = vmatpush1.bf16.msra.mxu0 %v465
    %499 = vmatprep.subr.bf16.mxu0 %v468
    %500 = vmatpush1.bf16.msra.mxu0 %v467
    %501 = vmatprep.subr.bf16.mxu0 %v470
    %502 = vmatpush1.bf16.msra.mxu0 %v469
    %503 = vmatprep.subr.bf16.mxu0 %v472
    %504 = vmatpush1.bf16.msra.mxu0 %v471
    %505 = vmatprep.subr.bf16.mxu0 %v474
    %506 = vmatpush1.bf16.msra.mxu0 %v473
    %507 = vmatprep.subr.bf16.mxu0 0
    %508 = vmatpush1.bf16.msra.mxu0 0
    %509 = vmatprep.subr.bf16.mxu0 0
    %510 = vmatpush1.bf16.msra.mxu0 0
    %511 = vmatprep.subr.bf16.mxu0 0
    %512 = vmatpush1.bf16.msra.mxu0 0
    %513 = vmatprep.subr.bf16.mxu0 0
    %514 = vmatpush1.bf16.msra.mxu0 0
    %515 = vmatprep.subr.bf16.mxu0 0
    %516 = vmatpush1.bf16.msra.mxu0 0
    %517 = vmatprep.subr.bf16.mxu0 0
    %518 = vmatpush1.bf16.msra.mxu0 0
    %519 = vmatprep.subr.bf16.mxu0 0
    %520 = vmatpush1.bf16.msra.mxu0 0
    %521 = vmatprep.subr.bf16.mxu0 0
    %522 = vmatpush1.bf16.msra.mxu0 0
    %523 = vmatprep.mubr.bf16.mxu0 0
    %524 = vmatmul.mubr.bf16.gmra.mrb[0].mxu0 %v403
    %v525 = vpop.f32.mrb[0].mxu0
    %v526 = vadd.f32 0.0, %v525
    %v527 = vpop.f32.mrb[0].mxu0
    %v528 = vadd.f32 0.0, %v527
    %v529 = vpop.f32.mrb[0].mxu0
    %v530 = vadd.f32 0.0, %v529
    %v531 = vpop.f32.mrb[0].mxu0
    %v532 = vadd.f32 0.0, %v531
    %533 = vmatprep.mubr.bf16.mxu0 0
    %534 = vmatmul.mubr.bf16.gmra.mrb[0].mxu0 %v404
    %v535 = vpop.f32.mrb[0].mxu0
    %v536 = vadd.f32 0.0, %v535
    %v537 = vpop.f32.mrb[0].mxu0
    %v538 = vadd.f32 0.0, %v537
    %v539 = vpop.f32.mrb[0].mxu0
    %v540 = vadd.f32 0.0, %v539
    %v541 = vpop.f32.mrb[0].mxu0
    %v542 = vadd.f32 0.0, %v541
    %543 = vmatprep.mubr.bf16.mxu0 0
    %544 = vmatmul.mubr.bf16.gmra.mrb[0].mxu0 %v405
    %v545 = vpop.f32.mrb[0].mxu0
    %v546 = vadd.f32 0.0, %v545
    %v547 = vpop.f32.mrb[0].mxu0
    %v548 = vadd.f32 0.0, %v547
    %v549 = vpop.f32.mrb[0].mxu0
    %v550 = vadd.f32 0.0, %v549
    %v551 = vpop.f32.mrb[0].mxu0
    %v552 = vadd.f32 0.0, %v551
    %553 = vmatprep.mubr.bf16.mxu0 0
    %554 = vmatmul.mubr.bf16.gmra.mrb[0].mxu0 %v406
    %v555 = vpop.f32.mrb[0].mxu0
    %v556 = vadd.f32 0.0, %v555
    %v557 = vpop.f32.mrb[0].mxu0
    %v558 = vadd.f32 0.0, %v557
    %v559 = vpop.f32.mrb[0].mxu0
    %v560 = vadd.f32 0.0, %v559
    %v561 = vpop.f32.mrb[0].mxu0
    %v562 = vadd.f32 0.0, %v561
    %563 = vmatprep.mubr.bf16.mxu0 0
    %564 = vmatmul.mubr.bf16.gmra.mrb[0].mxu0 %v407
    %v565 = vpop.f32.mrb[0].mxu0
    %v566 = vadd.f32 0.0, %v565
    %v567 = vpop.f32.mrb[0].mxu0
    %v568 = vadd.f32 0.0, %v567
    %v569 = vpop.f32.mrb[0].mxu0
    %v570 = vadd.f32 0.0, %v569
    %v571 = vpop.f32.mrb[0].mxu0
    %v572 = vadd.f32 0.0, %v571
    %573 = vmatprep.mubr.bf16.mxu0 0
    %574 = vmatmul.mubr.bf16.gmra.mrb[0].mxu0 %v408
    %v575 = vpop.f32.mrb[0].mxu0
    %v576 = vadd.f32 0.0, %v575
    %v577 = vpop.f32.mrb[0].mxu0
    %v578 = vadd.f32 0.0, %v577
    %v579 = vpop.f32.mrb[0].mxu0
    %v580 = vadd.f32 0.0, %v579
    %v581 = vpop.f32.mrb[0].mxu0
    %v582 = vadd.f32 0.0, %v581
    %583 = vmatprep.mubr.bf16.mxu0 0
    %584 = vmatmul.mubr.bf16.gmra.mrb[0].mxu0 %v409
    %v585 = vpop.f32.mrb[0].mxu0
    %v586 = vadd.f32 0.0, %v585
    %v587 = vpop.f32.mrb[0].mxu0
    %v588 = vadd.f32 0.0, %v587
    %v589 = vpop.f32.mrb[0].mxu0
    %v590 = vadd.f32 0.0, %v589
    %v591 = vpop.f32.mrb[0].mxu0
    %v592 = vadd.f32 0.0, %v591
    %593 = vmatprep.mubr.bf16.mxu0 0
    %594 = vmatmul.mubr.bf16.gmra.mrb[0].mxu0 %v410
    %v595 = vpop.f32.mrb[0].mxu0
    %v596 = vadd.f32 0.0, %v595
    %v597 = vpop.f32.mrb[0].mxu0
    %v598 = vadd.f32 0.0, %v597
    %v599 = vpop.f32.mrb[0].mxu0
    %v600 = vadd.f32 0.0, %v599
    %v601 = vpop.f32.mrb[0].mxu0
    %v602 = vadd.f32 0.0, %v601
    %603 = vdwg.mxu0
    %v604 = vlaneseq
    %v605 = vshrl.u32 %v604, 7
    %v606 = vsub.s32 0, %v605
    %v607 = vrot.slane %v121, %v606
    %v608 = vadd.f32 %v526, %v607
    %v609 = vadd.f32 %v530, %v607
    %v610 = vadd.f32 %v536, %v607
    %v611 = vadd.f32 %v540, %v607
    %v612 = vadd.f32 %v546, %v607
    %v613 = vadd.f32 %v550, %v607
    %v614 = vadd.f32 %v556, %v607
    %v615 = vadd.f32 %v560, %v607
    %v616 = vadd.f32 %v566, %v607
    %v617 = vadd.f32 %v570, %v607
    %v618 = vadd.f32 %v576, %v607
    %v619 = vadd.f32 %v580, %v607
    %v620 = vadd.f32 %v586, %v607
    %v621 = vadd.f32 %v590, %v607
    %v622 = vadd.f32 %v596, %v607
    %v623 = vadd.f32 %v600, %v607
    %v624 = vlaneseq
    %v625 = vshrl.u32 %v624, 7
    %v626 = vsub.s32 0, %v625
    %v627 = vrot.slane %v122, %v626
    %v628 = vadd.f32 %v528, %v627
    %v629 = vadd.f32 %v532, %v627
    %v630 = vadd.f32 %v538, %v627
    %v631 = vadd.f32 %v542, %v627
    %v632 = vadd.f32 %v548, %v627
    %v633 = vadd.f32 %v552, %v627
    %v634 = vadd.f32 %v558, %v627
    %v635 = vadd.f32 %v562, %v627
    %v636 = vadd.f32 %v568, %v627
    %v637 = vadd.f32 %v572, %v627
    %v638 = vadd.f32 %v578, %v627
    %v639 = vadd.f32 %v582, %v627
    %v640 = vadd.f32 %v588, %v627
    %v641 = vadd.f32 %v592, %v627
    %v642 = vadd.f32 %v598, %v627
    %v643 = vadd.f32 %v602, %v627
    %v644 = vpack.c.bf16 %v387, %v387
    %v645 = vpack.c.bf16 %v388, %v388
    %v646 = vpack.c.bf16 %v389, %v389
    %v647 = vpack.c.bf16 %v390, %v390
    %v648 = vpack.c.bf16 %v391, %v391
    %v649 = vpack.c.bf16 %v392, %v392
    %v650 = vpack.c.bf16 %v393, %v393
    %v651 = vpack.c.bf16 %v394, %v394
    %v652 = vpack.c.bf16 %v395, %v395
    %v653 = vpack.c.bf16 %v396, %v396
    %v654 = vpack.c.bf16 %v397, %v397
    %v655 = vpack.c.bf16 %v398, %v398
    %v656 = vpack.c.bf16 %v399, %v399
    %v657 = vpack.c.bf16 %v400, %v400
    %v658 = vpack.c.bf16 %v401, %v401
    %v659 = vpack.c.bf16 %v402, %v402
    %v660 = vlaneseq
    %v661 = vshrl.u32 %v660, 7
    %v662 = vsub.s32 0, %v661
    %v663 = vrot.slane %v120, %v662
    %v680 = vunpack.c.l.b16 %v644
    %v681 = vunpack.c.l.b16 %v645
    %v682 = vunpack.c.l.b16 %v646
    %v683 = vunpack.c.l.b16 %v647
    %v684 = vunpack.c.l.b16 %v648
    %v685 = vunpack.c.l.b16 %v649
    %v686 = vunpack.c.l.b16 %v650
    %v687 = vunpack.c.l.b16 %v651
    %v688 = vunpack.c.l.b16 %v652
    %v689 = vunpack.c.l.b16 %v653
    %v690 = vunpack.c.l.b16 %v654
    %v691 = vunpack.c.l.b16 %v655
    %v692 = vunpack.c.l.b16 %v656
    %v693 = vunpack.c.l.b16 %v657
    %v694 = vunpack.c.l.b16 %v658
    %v695 = vunpack.c.l.b16 %v659
    %v696 = vrot.slane %v681, 7
    %vm697 = vcmask 1041409
    %v698 = vsel %vm697, %v696, %v680
    %v699 = vrot.slane %v682, 6
    %vm700 = vcmask 1042434
    %v701 = vsel %vm700, %v699, %v698
    %v702 = vrot.slane %v683, 5
    %vm703 = vcmask 1043459
    %v704 = vsel %vm703, %v702, %v701
    %v705 = vrot.slane %v684, 4
    %vm706 = vcmask 1044484
    %v707 = vsel %vm706, %v705, %v704
    %v708 = vrot.slane %v685, 3
    %vm709 = vcmask 1045509
    %v710 = vsel %vm709, %v708, %v707
    %v711 = vrot.slane %v686, 2
    %vm712 = vcmask 1046534
    %v713 = vsel %vm712, %v711, %v710
    %v714 = vrot.slane %v687, 1
    %vm715 = vcmask 1047559
    %v716 = vsel %vm715, %v714, %v713
    %v717 = vrot.slane %v689, 7
    %v718 = vsel %vm697, %v717, %v688
    %v719 = vrot.slane %v690, 6
    %v720 = vsel %vm700, %v719, %v718
    %v721 = vrot.slane %v691, 5
    %v722 = vsel %vm703, %v721, %v720
    %v723 = vrot.slane %v692, 4
    %v724 = vsel %vm706, %v723, %v722
    %v725 = vrot.slane %v693, 3
    %v726 = vsel %vm709, %v725, %v724
    %v727 = vrot.slane %v694, 2
    %v728 = vsel %vm712, %v727, %v726
    %v729 = vrot.slane %v695, 1
    %v730 = vsel %vm715, %v729, %v728
    %v731 = vpack.c.b16 %v730, %v716
    %v749 = vunpack.c.l.b16 %v129
    %v750 = vunpack.c.l.b16 %v130
    %v751 = vunpack.c.l.b16 %v131
    %v752 = vunpack.c.l.b16 %v132
    %v753 = vunpack.c.l.b16 %v133
    %v754 = vunpack.c.l.b16 %v134
    %v755 = vunpack.c.l.b16 %v135
    %v756 = vunpack.c.l.b16 %v136
    %v757 = vunpack.c.l.b16 %v137
    %v758 = vunpack.c.l.b16 %v138
    %v759 = vunpack.c.l.b16 %v139
    %v760 = vunpack.c.l.b16 %v140
    %v761 = vunpack.c.l.b16 %v141
    %v762 = vunpack.c.l.b16 %v142
    %v763 = vunpack.c.l.b16 %v143
    %v764 = vunpack.c.l.b16 %v144
    %v765 = vpack.c.b16 %v750, %v749
    %v766 = vpack.c.b16 %v752, %v751
    %v767 = vpack.c.b16 %v754, %v753
    %v768 = vpack.c.b16 %v756, %v755
    %v769 = vpack.c.b16 %v758, %v757
    %v770 = vpack.c.b16 %v760, %v759
    %v771 = vpack.c.b16 %v762, %v761
    %v772 = vpack.c.b16 %v764, %v763
    %781 = vmatprep.subr.bf16.mxu0 0
    %782 = vmatpush1.bf16.msra.mxu0 %v765
    %783 = vmatprep.subr.bf16.mxu0 0
    %784 = vmatpush1.bf16.msra.mxu0 %v766
    %785 = vmatprep.subr.bf16.mxu0 0
    %786 = vmatpush1.bf16.msra.mxu0 %v767
    %787 = vmatprep.subr.bf16.mxu0 0
    %788 = vmatpush1.bf16.msra.mxu0 %v768
    %789 = vmatprep.subr.bf16.mxu0 0
    %790 = vmatpush1.bf16.msra.mxu0 %v769
    %791 = vmatprep.subr.bf16.mxu0 0
    %792 = vmatpush1.bf16.msra.mxu0 %v770
    %793 = vmatprep.subr.bf16.mxu0 0
    %794 = vmatpush1.bf16.msra.mxu0 %v771
    %795 = vmatprep.subr.bf16.mxu0 0
    %796 = vmatpush1.bf16.msra.mxu0 %v772
    %797 = vmatprep.subr.bf16.mxu0 0
    %798 = vmatpush1.bf16.msra.mxu0 0
    %799 = vmatprep.subr.bf16.mxu0 0
    %800 = vmatpush1.bf16.msra.mxu0 0
    %801 = vmatprep.subr.bf16.mxu0 0
    %802 = vmatpush1.bf16.msra.mxu0 0
    %803 = vmatprep.subr.bf16.mxu0 0
    %804 = vmatpush1.bf16.msra.mxu0 0
    %805 = vmatprep.subr.bf16.mxu0 0
    %806 = vmatpush1.bf16.msra.mxu0 0
    %807 = vmatprep.subr.bf16.mxu0 0
    %808 = vmatpush1.bf16.msra.mxu0 0
    %809 = vmatprep.subr.bf16.mxu0 0
    %810 = vmatpush1.bf16.msra.mxu0 0
    %811 = vmatprep.subr.bf16.mxu0 0
    %812 = vmatpush1.bf16.msra.mxu0 0
    %813 = vmatprep.mubr.bf16.mxu0 0
    %814 = vmatmul.mubr.bf16.gmra.mrb[0].mxu0 %v731
    %v815 = vpop.f32.mrb[0].mxu0
    %v816 = vadd.f32 %v663, %v815
    %v817 = vpop.f32.mrb[0].mxu0
    %v818 = vpop.f32.mrb[0].mxu0
    %v819 = vadd.f32 %v663, %v818
    %v820 = vpop.f32.mrb[0].mxu0
    %821 = vdwg.mxu0
    %v822 = vld [vmem:[#allocation5] sm:$0xff]
    %v823 = vld [vmem:[#allocation5 + $0x8] sm:$0xff]
    %v826 = vcombine.high %v816, %v816
    %v828 = vunpack.c.l.s4 1966171168
    %v829 = vunpack.c.0.s8 %v828
    %v830 = vlaneseq
    %v831 = vshrl.u32 %v830, 7
    %v832 = vsub.s32 %v829, %v831
    %v833 = vrot.slane %v816, %v832
    %v835 = vunpack.c.l.s4 1966171168
    %v836 = vunpack.c.0.s8 %v835
    %v837 = vlaneseq
    %v838 = vshrl.u32 %v837, 7
    %v839 = vsub.s32 %v836, %v838
    %v840 = vrot.slane %v826, %v839
    %v841 = vcombine.high %v833, %v833
    %v842 = vcombine.high %v840, %v840
    %v844 = vunpack.c.l.s4 1966171168
    %v845 = vunpack.c.0.s8 %v844
    %v846 = vlaneseq
    %v847 = vshrl.u32 %v846, 7
    %v848 = vsub.s32 %v845, %v847
    %v849 = vrot.slane %v833, %v848
    %v851 = vunpack.c.l.s4 1966171168
    %v852 = vunpack.c.0.s8 %v851
    %v853 = vlaneseq
    %v854 = vshrl.u32 %v853, 7
    %v855 = vsub.s32 %v852, %v854
    %v856 = vrot.slane %v840, %v855
    %v858 = vunpack.c.l.s4 1966171168
    %v859 = vunpack.c.0.s8 %v858
    %v860 = vlaneseq
    %v861 = vshrl.u32 %v860, 7
    %v862 = vsub.s32 %v859, %v861
    %v863 = vrot.slane %v841, %v862
    %v865 = vunpack.c.l.s4 1966171168
    %v866 = vunpack.c.0.s8 %v865
    %v867 = vlaneseq
    %v868 = vshrl.u32 %v867, 7
    %v869 = vsub.s32 %v866, %v868
    %v870 = vrot.slane %v842, %v869
    %v871 = vcombine.high %v849, %v849
    %v872 = vcombine.high %v856, %v856
    %v873 = vcombine.high %v863, %v863
    %v874 = vcombine.high %v870, %v870
    %v875 = vcombine.high %v819, %v819
    %v877 = vunpack.c.l.s4 1966171168
    %v878 = vunpack.c.0.s8 %v877
    %v879 = vlaneseq
    %v880 = vshrl.u32 %v879, 7
    %v881 = vsub.s32 %v878, %v880
    %v882 = vrot.slane %v819, %v881
    %v884 = vunpack.c.l.s4 1966171168
    %v885 = vunpack.c.0.s8 %v884
    %v886 = vlaneseq
    %v887 = vshrl.u32 %v886, 7
    %v888 = vsub.s32 %v885, %v887
    %v889 = vrot.slane %v875, %v888
    %v890 = vcombine.high %v882, %v882
    %v891 = vcombine.high %v889, %v889
    %v893 = vunpack.c.l.s4 1966171168
    %v894 = vunpack.c.0.s8 %v893
    %v895 = vlaneseq
    %v896 = vshrl.u32 %v895, 7
    %v897 = vsub.s32 %v894, %v896
    %v898 = vrot.slane %v882, %v897
    %v900 = vunpack.c.l.s4 1966171168
    %v901 = vunpack.c.0.s8 %v900
    %v902 = vlaneseq
    %v903 = vshrl.u32 %v902, 7
    %v904 = vsub.s32 %v901, %v903
    %v905 = vrot.slane %v889, %v904
    %v907 = vunpack.c.l.s4 1966171168
    %v908 = vunpack.c.0.s8 %v907
    %v909 = vlaneseq
    %v910 = vshrl.u32 %v909, 7
    %v911 = vsub.s32 %v908, %v910
    %v912 = vrot.slane %v890, %v911
    %v914 = vunpack.c.l.s4 1966171168
    %v915 = vunpack.c.0.s8 %v914
    %v916 = vlaneseq
    %v917 = vshrl.u32 %v916, 7
    %v918 = vsub.s32 %v915, %v917
    %v919 = vrot.slane %v891, %v918
    %v920 = vcombine.high %v898, %v898
    %v921 = vcombine.high %v905, %v905
    %v922 = vcombine.high %v912, %v912
    %v923 = vcombine.high %v919, %v919
    %v924 = vlaneseq
    %v925 = vshrl.u32 %v924, 7
    %v926 = vsub.s32 0, %v925
    %v927 = vrot.slane %v849, %v926
    %v928 = vlaneseq
    %v929 = vshrl.u32 %v928, 7
    %v930 = vsub.s32 0, %v929
    %v931 = vrot.slane %v863, %v930
    %v932 = vlaneseq
    %v933 = vshrl.u32 %v932, 7
    %v934 = vsub.s32 0, %v933
    %v935 = vrot.slane %v871, %v934
    %v936 = vlaneseq
    %v937 = vshrl.u32 %v936, 7
    %v938 = vsub.s32 0, %v937
    %v939 = vrot.slane %v873, %v938
    %v940 = vlaneseq
    %v941 = vshrl.u32 %v940, 7
    %v942 = vsub.s32 0, %v941
    %v943 = vrot.slane %v856, %v942
    %v944 = vlaneseq
    %v945 = vshrl.u32 %v944, 7
    %v946 = vsub.s32 0, %v945
    %v947 = vrot.slane %v870, %v946
    %v948 = vlaneseq
    %v949 = vshrl.u32 %v948, 7
    %v950 = vsub.s32 0, %v949
    %v951 = vrot.slane %v872, %v950
    %v952 = vlaneseq
    %v953 = vshrl.u32 %v952, 7
    %v954 = vsub.s32 0, %v953
    %v955 = vrot.slane %v874, %v954
    %v956 = vlaneseq
    %v957 = vshrl.u32 %v956, 7
    %v958 = vsub.s32 0, %v957
    %v959 = vrot.slane %v898, %v958
    %v960 = vlaneseq
    %v961 = vshrl.u32 %v960, 7
    %v962 = vsub.s32 0, %v961
    %v963 = vrot.slane %v912, %v962
    %v964 = vlaneseq
    %v965 = vshrl.u32 %v964, 7
    %v966 = vsub.s32 0, %v965
    %v967 = vrot.slane %v920, %v966
    %v968 = vlaneseq
    %v969 = vshrl.u32 %v968, 7
    %v970 = vsub.s32 0, %v969
    %v971 = vrot.slane %v922, %v970
    %v972 = vlaneseq
    %v973 = vshrl.u32 %v972, 7
    %v974 = vsub.s32 0, %v973
    %v975 = vrot.slane %v905, %v974
    %v976 = vlaneseq
    %v977 = vshrl.u32 %v976, 7
    %v978 = vsub.s32 0, %v977
    %v979 = vrot.slane %v919, %v978
    %v980 = vlaneseq
    %v981 = vshrl.u32 %v980, 7
    %v982 = vsub.s32 0, %v981
    %v983 = vrot.slane %v921, %v982
    %v984 = vlaneseq
    %v985 = vshrl.u32 %v984, 7
    %v986 = vsub.s32 0, %v985
    %v987 = vrot.slane %v923, %v986
    %v1004 = vmul.f32 %v927, %v608
    %v1005 = vmul.f32 %v931, %v609
    %v1006 = vmul.f32 %v935, %v610
    %v1007 = vmul.f32 %v939, %v611
    %v1008 = vmul.f32 %v943, %v612
    %v1009 = vmul.f32 %v947, %v613
    %v1010 = vmul.f32 %v951, %v614
    %v1011 = vmul.f32 %v955, %v615
    %v1012 = vmul.f32 %v959, %v616
    %v1013 = vmul.f32 %v963, %v617
    %v1014 = vmul.f32 %v967, %v618
    %v1015 = vmul.f32 %v971, %v619
    %v1016 = vmul.f32 %v975, %v620
    %v1017 = vmul.f32 %v979, %v621
    %v1018 = vmul.f32 %v983, %v622
    %v1019 = vmul.f32 %v987, %v623
    %vm1020 = vcmask 523264
    %v1021 = vsel %vm1020, %v1004, 0.0
    %1022 = vadd.xlane.f32.xlu0 %v1021
    %v1023 = vpop.xlane.xlu0 %1022
    %v1024 = vsel %vm1020, %v1005, 0.0
    %1025 = vadd.xlane.f32.xlu0 %v1024
    %v1026 = vpop.xlane.xlu0 %1025
    %v1027 = vsel %vm1020, %v1006, 0.0
    %1028 = vadd.xlane.f32.xlu0 %v1027
    %v1029 = vpop.xlane.xlu0 %1028
    %v1030 = vsel %vm1020, %v1007, 0.0
    %1031 = vadd.xlane.f32.xlu0 %v1030
    %v1032 = vpop.xlane.xlu0 %1031
    %v1033 = vsel %vm1020, %v1008, 0.0
    %1034 = vadd.xlane.f32.xlu0 %v1033
    %v1035 = vpop.xlane.xlu0 %1034
    %v1036 = vsel %vm1020, %v1009, 0.0
    %1037 = vadd.xlane.f32.xlu0 %v1036
    %v1038 = vpop.xlane.xlu0 %1037
    %v1039 = vsel %vm1020, %v1010, 0.0
    %1040 = vadd.xlane.f32.xlu0 %v1039
    %v1041 = vpop.xlane.xlu0 %1040
    %v1042 = vsel %vm1020, %v1011, 0.0
    %1043 = vadd.xlane.f32.xlu0 %v1042
    %v1044 = vpop.xlane.xlu0 %1043
    %v1045 = vsel %vm1020, %v1012, 0.0
    %1046 = vadd.xlane.f32.xlu0 %v1045
    %v1047 = vpop.xlane.xlu0 %1046
    %v1048 = vsel %vm1020, %v1013, 0.0
    %1049 = vadd.xlane.f32.xlu0 %v1048
    %v1050 = vpop.xlane.xlu0 %1049
    %v1051 = vsel %vm1020, %v1014, 0.0
    %1052 = vadd.xlane.f32.xlu0 %v1051
    %v1053 = vpop.xlane.xlu0 %1052
    %v1054 = vsel %vm1020, %v1015, 0.0
    %1055 = vadd.xlane.f32.xlu0 %v1054
    %v1056 = vpop.xlane.xlu0 %1055
    %v1057 = vsel %vm1020, %v1016, 0.0
    %1058 = vadd.xlane.f32.xlu0 %v1057
    %v1059 = vpop.xlane.xlu0 %1058
    %v1060 = vsel %vm1020, %v1017, 0.0
    %1061 = vadd.xlane.f32.xlu0 %v1060
    %v1062 = vpop.xlane.xlu0 %1061
    %v1063 = vsel %vm1020, %v1018, 0.0
    %1064 = vadd.xlane.f32.xlu0 %v1063
    %v1065 = vpop.xlane.xlu0 %1064
    %v1066 = vsel %vm1020, %v1019, 0.0
    %1067 = vadd.xlane.f32.xlu0 %v1066
    %v1068 = vpop.xlane.xlu0 %1067
    %v1069 = vmul.f32 %v1023, 0.125
    %v1070 = vmul.f32 %v1026, 0.125
    %v1071 = vmul.f32 %v1029, 0.125
    %v1072 = vmul.f32 %v1032, 0.125
    %v1073 = vmul.f32 %v1035, 0.125
    %v1074 = vmul.f32 %v1038, 0.125
    %v1075 = vmul.f32 %v1041, 0.125
    %v1076 = vmul.f32 %v1044, 0.125
    %v1077 = vmul.f32 %v1047, 0.125
    %v1078 = vmul.f32 %v1050, 0.125
    %v1079 = vmul.f32 %v1053, 0.125
    %v1080 = vmul.f32 %v1056, 0.125
    %v1081 = vmul.f32 %v1059, 0.125
    %v1082 = vmul.f32 %v1062, 0.125
    %v1083 = vmul.f32 %v1065, 0.125
    %v1084 = vmul.f32 %v1068, 0.125
    %v1087 = vlaneseq
    %v1088 = vshrl.u32 %v1087, 7
    %v1089 = vsub.s32 0, %v1088
    %v1090 = vrot.slane %v822, %v1089
    %1092 = vbcast.lane.b32.xlu0 %v1090, 256
    %v1093 = vpop.permute.xlu0 %1092
    %v1094 = vlaneseq
    %v1095 = vshrl.u32 %v1094, 7
    %v1096 = vsub.s32 1, %v1095
    %v1097 = vrot.slane %v822, %v1096
    %1099 = vbcast.lane.b32.xlu0 %v1097, 256
    %v1100 = vpop.permute.xlu0 %1099
    %v1101 = vlaneseq
    %v1102 = vshrl.u32 %v1101, 7
    %v1103 = vsub.s32 2, %v1102
    %v1104 = vrot.slane %v822, %v1103
    %1106 = vbcast.lane.b32.xlu0 %v1104, 256
    %v1107 = vpop.permute.xlu0 %1106
    %v1108 = vlaneseq
    %v1109 = vshrl.u32 %v1108, 7
    %v1110 = vsub.s32 3, %v1109
    %v1111 = vrot.slane %v822, %v1110
    %1113 = vbcast.lane.b32.xlu0 %v1111, 256
    %v1114 = vpop.permute.xlu0 %1113
    %v1115 = vlaneseq
    %v1116 = vshrl.u32 %v1115, 7
    %v1117 = vsub.s32 4, %v1116
    %v1118 = vrot.slane %v822, %v1117
    %1120 = vbcast.lane.b32.xlu0 %v1118, 256
    %v1121 = vpop.permute.xlu0 %1120
    %v1122 = vlaneseq
    %v1123 = vshrl.u32 %v1122, 7
    %v1124 = vsub.s32 5, %v1123
    %v1125 = vrot.slane %v822, %v1124
    %1127 = vbcast.lane.b32.xlu0 %v1125, 256
    %v1128 = vpop.permute.xlu0 %1127
    %v1129 = vlaneseq
    %v1130 = vshrl.u32 %v1129, 7
    %v1131 = vsub.s32 6, %v1130
    %v1132 = vrot.slane %v822, %v1131
    %1134 = vbcast.lane.b32.xlu0 %v1132, 256
    %v1135 = vpop.permute.xlu0 %1134
    %v1136 = vlaneseq
    %v1137 = vshrl.u32 %v1136, 7
    %v1138 = vsub.s32 7, %v1137
    %v1139 = vrot.slane %v822, %v1138
    %1141 = vbcast.lane.b32.xlu0 %v1139, 256
    %v1142 = vpop.permute.xlu0 %1141
    %v1143 = vlaneseq
    %v1144 = vshrl.u32 %v1143, 7
    %v1145 = vsub.s32 0, %v1144
    %v1146 = vrot.slane %v823, %v1145
    %1148 = vbcast.lane.b32.xlu0 %v1146, 256
    %v1149 = vpop.permute.xlu0 %1148
    %v1150 = vlaneseq
    %v1151 = vshrl.u32 %v1150, 7
    %v1152 = vsub.s32 1, %v1151
    %v1153 = vrot.slane %v823, %v1152
    %1155 = vbcast.lane.b32.xlu0 %v1153, 256
    %v1156 = vpop.permute.xlu0 %1155
    %v1157 = vlaneseq
    %v1158 = vshrl.u32 %v1157, 7
    %v1159 = vsub.s32 2, %v1158
    %v1160 = vrot.slane %v823, %v1159
    %1162 = vbcast.lane.b32.xlu0 %v1160, 256
    %v1163 = vpop.permute.xlu0 %1162
    %v1164 = vlaneseq
    %v1165 = vshrl.u32 %v1164, 7
    %v1166 = vsub.s32 3, %v1165
    %v1167 = vrot.slane %v823, %v1166
    %1169 = vbcast.lane.b32.xlu0 %v1167, 256
    %v1170 = vpop.permute.xlu0 %1169
    %v1171 = vlaneseq
    %v1172 = vshrl.u32 %v1171, 7
    %v1173 = vsub.s32 4, %v1172
    %v1174 = vrot.slane %v823, %v1173
    %1176 = vbcast.lane.b32.xlu0 %v1174, 256
    %v1177 = vpop.permute.xlu0 %1176
    %v1178 = vlaneseq
    %v1179 = vshrl.u32 %v1178, 7
    %v1180 = vsub.s32 5, %v1179
    %v1181 = vrot.slane %v823, %v1180
    %1183 = vbcast.lane.b32.xlu0 %v1181, 256
    %v1184 = vpop.permute.xlu0 %1183
    %v1185 = vlaneseq
    %v1186 = vshrl.u32 %v1185, 7
    %v1187 = vsub.s32 6, %v1186
    %v1188 = vrot.slane %v823, %v1187
    %1190 = vbcast.lane.b32.xlu0 %v1188, 256
    %v1191 = vpop.permute.xlu0 %1190
    %v1192 = vlaneseq
    %v1193 = vshrl.u32 %v1192, 7
    %v1194 = vsub.s32 7, %v1193
    %v1195 = vrot.slane %v823, %v1194
    %1197 = vbcast.lane.b32.xlu0 %v1195, 256
    %v1198 = vpop.permute.xlu0 %1197
    %v1215 = vadd.f32 %v1069, %v1093
    %v1216 = vadd.f32 %v1070, %v1100
    %v1217 = vadd.f32 %v1071, %v1107
    %v1218 = vadd.f32 %v1072, %v1114
    %v1219 = vadd.f32 %v1073, %v1121
    %v1220 = vadd.f32 %v1074, %v1128
    %v1221 = vadd.f32 %v1075, %v1135
    %v1222 = vadd.f32 %v1076, %v1142
    %v1223 = vadd.f32 %v1077, %v1149
    %v1224 = vadd.f32 %v1078, %v1156
    %v1225 = vadd.f32 %v1079, %v1163
    %v1226 = vadd.f32 %v1080, %v1170
    %v1227 = vadd.f32 %v1081, %v1177
    %v1228 = vadd.f32 %v1082, %v1184
    %v1229 = vadd.f32 %v1083, %v1191
    %v1230 = vadd.f32 %v1084, %v1198
    %1247 = vrot.lane.b32.xlu0 %v1004, 64
    %v1248 = vpop.permute.xlu0 %1247
    %1249 = vrot.lane.b32.xlu0 %v1005, 64
    %v1250 = vpop.permute.xlu0 %1249
    %1251 = vrot.lane.b32.xlu0 %v1006, 64
    %v1252 = vpop.permute.xlu0 %1251
    %1253 = vrot.lane.b32.xlu0 %v1007, 64
    %v1254 = vpop.permute.xlu0 %1253
    %1255 = vrot.lane.b32.xlu0 %v1008, 64
    %v1256 = vpop.permute.xlu0 %1255
    %1257 = vrot.lane.b32.xlu0 %v1009, 64
    %v1258 = vpop.permute.xlu0 %1257
    %1259 = vrot.lane.b32.xlu0 %v1010, 64
    %v1260 = vpop.permute.xlu0 %1259
    %1261 = vrot.lane.b32.xlu0 %v1011, 64
    %v1262 = vpop.permute.xlu0 %1261
    %1263 = vrot.lane.b32.xlu0 %v1012, 64
    %v1264 = vpop.permute.xlu0 %1263
    %1265 = vrot.lane.b32.xlu0 %v1013, 64
    %v1266 = vpop.permute.xlu0 %1265
    %1267 = vrot.lane.b32.xlu0 %v1014, 64
    %v1268 = vpop.permute.xlu0 %1267
    %1269 = vrot.lane.b32.xlu0 %v1015, 64
    %v1270 = vpop.permute.xlu0 %1269
    %1271 = vrot.lane.b32.xlu0 %v1016, 64
    %v1272 = vpop.permute.xlu0 %1271
    %1273 = vrot.lane.b32.xlu0 %v1017, 64
    %v1274 = vpop.permute.xlu0 %1273
    %1275 = vrot.lane.b32.xlu0 %v1018, 64
    %v1276 = vpop.permute.xlu0 %1275
    %1277 = vrot.lane.b32.xlu0 %v1019, 64
    %v1278 = vpop.permute.xlu0 %1277
    %v1295 = vsel %vm1020, %v1248, 0.0
    %1296 = vadd.xlane.f32.xlu0 %v1295
    %v1297 = vpop.xlane.xlu0 %1296
    %v1298 = vsel %vm1020, %v1250, 0.0
    %1299 = vadd.xlane.f32.xlu0 %v1298
    %v1300 = vpop.xlane.xlu0 %1299
    %v1301 = vsel %vm1020, %v1252, 0.0
    %1302 = vadd.xlane.f32.xlu0 %v1301
    %v1303 = vpop.xlane.xlu0 %1302
    %v1304 = vsel %vm1020, %v1254, 0.0
    %1305 = vadd.xlane.f32.xlu0 %v1304
    %v1306 = vpop.xlane.xlu0 %1305
    %v1307 = vsel %vm1020, %v1256, 0.0
    %1308 = vadd.xlane.f32.xlu0 %v1307
    %v1309 = vpop.xlane.xlu0 %1308
    %v1310 = vsel %vm1020, %v1258, 0.0
    %1311 = vadd.xlane.f32.xlu0 %v1310
    %v1312 = vpop.xlane.xlu0 %1311
    %v1313 = vsel %vm1020, %v1260, 0.0
    %1314 = vadd.xlane.f32.xlu0 %v1313
    %v1315 = vpop.xlane.xlu0 %1314
    %v1316 = vsel %vm1020, %v1262, 0.0
    %1317 = vadd.xlane.f32.xlu0 %v1316
    %v1318 = vpop.xlane.xlu0 %1317
    %v1319 = vsel %vm1020, %v1264, 0.0
    %1320 = vadd.xlane.f32.xlu0 %v1319
    %v1321 = vpop.xlane.xlu0 %1320
    %v1322 = vsel %vm1020, %v1266, 0.0
    %1323 = vadd.xlane.f32.xlu0 %v1322
    %v1324 = vpop.xlane.xlu0 %1323
    %v1325 = vsel %vm1020, %v1268, 0.0
    %1326 = vadd.xlane.f32.xlu0 %v1325
    %v1327 = vpop.xlane.xlu0 %1326
    %v1328 = vsel %vm1020, %v1270, 0.0
    %1329 = vadd.xlane.f32.xlu0 %v1328
    %v1330 = vpop.xlane.xlu0 %1329
    %v1331 = vsel %vm1020, %v1272, 0.0
    %1332 = vadd.xlane.f32.xlu0 %v1331
    %v1333 = vpop.xlane.xlu0 %1332
    %v1334 = vsel %vm1020, %v1274, 0.0
    %1335 = vadd.xlane.f32.xlu0 %v1334
    %v1336 = vpop.xlane.xlu0 %1335
    %v1337 = vsel %vm1020, %v1276, 0.0
    %1338 = vadd.xlane.f32.xlu0 %v1337
    %v1339 = vpop.xlane.xlu0 %1338
    %v1340 = vsel %vm1020, %v1278, 0.0
    %1341 = vadd.xlane.f32.xlu0 %v1340
    %v1342 = vpop.xlane.xlu0 %1341
    %v1343 = vmul.f32 %v1297, 0.125
    %v1344 = vmul.f32 %v1300, 0.125
    %v1345 = vmul.f32 %v1303, 0.125
    %v1346 = vmul.f32 %v1306, 0.125
    %v1347 = vmul.f32 %v1309, 0.125
    %v1348 = vmul.f32 %v1312, 0.125
    %v1349 = vmul.f32 %v1315, 0.125
    %v1350 = vmul.f32 %v1318, 0.125
    %v1351 = vmul.f32 %v1321, 0.125
    %v1352 = vmul.f32 %v1324, 0.125
    %v1353 = vmul.f32 %v1327, 0.125
    %v1354 = vmul.f32 %v1330, 0.125
    %v1355 = vmul.f32 %v1333, 0.125
    %v1356 = vmul.f32 %v1336, 0.125
    %v1357 = vmul.f32 %v1339, 0.125
    %v1358 = vmul.f32 %v1342, 0.125
    %v1359 = vadd.f32 %v1343, %v1093
    %v1360 = vadd.f32 %v1344, %v1100
    %v1361 = vadd.f32 %v1345, %v1107
    %v1362 = vadd.f32 %v1346, %v1114
    %v1363 = vadd.f32 %v1347, %v1121
    %v1364 = vadd.f32 %v1348, %v1128
    %v1365 = vadd.f32 %v1349, %v1135
    %v1366 = vadd.f32 %v1350, %v1142
    %v1367 = vadd.f32 %v1351, %v1149
    %v1368 = vadd.f32 %v1352, %v1156
    %v1369 = vadd.f32 %v1353, %v1163
    %v1370 = vadd.f32 %v1354, %v1170
    %v1371 = vadd.f32 %v1355, %v1177
    %v1372 = vadd.f32 %v1356, %v1184
    %v1373 = vadd.f32 %v1357, %v1191
    %v1374 = vadd.f32 %v1358, %v1198
    %1391 = vset.pattern.permute.xlu0 0
    %1392 = vperm.xlu0 %1391, %v1215
    %v1393 = vpop.permute.xlu0 %1392
    %1394 = vset.pattern.permute.xlu0 0
    %1395 = vperm.xlu0 %1394, %v1216
    %v1396 = vpop.permute.xlu0 %1395
    %1397 = vset.pattern.permute.xlu0 0
    %1398 = vperm.xlu0 %1397, %v1217
    %v1399 = vpop.permute.xlu0 %1398
    %1400 = vset.pattern.permute.xlu0 0
    %1401 = vperm.xlu0 %1400, %v1218
    %v1402 = vpop.permute.xlu0 %1401
    %1403 = vset.pattern.permute.xlu0 0
    %1404 = vperm.xlu0 %1403, %v1219
    %v1405 = vpop.permute.xlu0 %1404
    %1406 = vset.pattern.permute.xlu0 0
    %1407 = vperm.xlu0 %1406, %v1220
    %v1408 = vpop.permute.xlu0 %1407
    %1409 = vset.pattern.permute.xlu0 0
    %1410 = vperm.xlu0 %1409, %v1221
    %v1411 = vpop.permute.xlu0 %1410
    %1412 = vset.pattern.permute.xlu0 0
    %1413 = vperm.xlu0 %1412, %v1222
    %v1414 = vpop.permute.xlu0 %1413
    %1415 = vset.pattern.permute.xlu0 0
    %1416 = vperm.xlu0 %1415, %v1223
    %v1417 = vpop.permute.xlu0 %1416
    %1418 = vset.pattern.permute.xlu0 0
    %1419 = vperm.xlu0 %1418, %v1224
    %v1420 = vpop.permute.xlu0 %1419
    %1421 = vset.pattern.permute.xlu0 0
    %1422 = vperm.xlu0 %1421, %v1225
    %v1423 = vpop.permute.xlu0 %1422
    %1424 = vset.pattern.permute.xlu0 0
    %1425 = vperm.xlu0 %1424, %v1226
    %v1426 = vpop.permute.xlu0 %1425
    %1427 = vset.pattern.permute.xlu0 0
    %1428 = vperm.xlu0 %1427, %v1227
    %v1429 = vpop.permute.xlu0 %1428
    %1430 = vset.pattern.permute.xlu0 0
    %1431 = vperm.xlu0 %1430, %v1228
    %v1432 = vpop.permute.xlu0 %1431
    %1433 = vset.pattern.permute.xlu0 0
    %1434 = vperm.xlu0 %1433, %v1229
    %v1435 = vpop.permute.xlu0 %1434
    %1436 = vset.pattern.permute.xlu0 0
    %1437 = vperm.xlu0 %1436, %v1230
    %v1438 = vpop.permute.xlu0 %1437
    %v1439 = vlaneseq
    %v1440 = vand.u32 %v1439, 127
    %v1441 = vlaneseq
    %v1442 = vshrl.u32 %v1441, 7
    %v1443 = vsub.s32 %v1440, %v1442
    %v1444 = vrot.slane %v1393, %v1443
    %v1445 = vlaneseq
    %v1446 = vshrl.u32 %v1445, 7
    %v1447 = vsub.s32 %v1440, %v1446
    %v1448 = vrot.slane %v1396, %v1447
    %v1449 = vlaneseq
    %v1450 = vshrl.u32 %v1449, 7
    %v1451 = vsub.s32 %v1440, %v1450
    %v1452 = vrot.slane %v1399, %v1451
    %v1453 = vlaneseq
    %v1454 = vshrl.u32 %v1453, 7
    %v1455 = vsub.s32 %v1440, %v1454
    %v1456 = vrot.slane %v1402, %v1455
    %v1457 = vlaneseq
    %v1458 = vshrl.u32 %v1457, 7
    %v1459 = vsub.s32 %v1440, %v1458
    %v1460 = vrot.slane %v1405, %v1459
    %v1461 = vlaneseq
    %v1462 = vshrl.u32 %v1461, 7
    %v1463 = vsub.s32 %v1440, %v1462
    %v1464 = vrot.slane %v1408, %v1463
    %v1465 = vlaneseq
    %v1466 = vshrl.u32 %v1465, 7
    %v1467 = vsub.s32 %v1440, %v1466
    %v1468 = vrot.slane %v1411, %v1467
    %v1469 = vlaneseq
    %v1470 = vshrl.u32 %v1469, 7
    %v1471 = vsub.s32 %v1440, %v1470
    %v1472 = vrot.slane %v1414, %v1471
    %v1473 = vlaneseq
    %v1474 = vshrl.u32 %v1473, 7
    %v1475 = vsub.s32 %v1440, %v1474
    %v1476 = vrot.slane %v1417, %v1475
    %v1477 = vlaneseq
    %v1478 = vshrl.u32 %v1477, 7
    %v1479 = vsub.s32 %v1440, %v1478
    %v1480 = vrot.slane %v1420, %v1479
    %v1481 = vlaneseq
    %v1482 = vshrl.u32 %v1481, 7
    %v1483 = vsub.s32 %v1440, %v1482
    %v1484 = vrot.slane %v1423, %v1483
    %v1485 = vlaneseq
    %v1486 = vshrl.u32 %v1485, 7
    %v1487 = vsub.s32 %v1440, %v1486
    %v1488 = vrot.slane %v1426, %v1487
    %v1489 = vlaneseq
    %v1490 = vshrl.u32 %v1489, 7
    %v1491 = vsub.s32 %v1440, %v1490
    %v1492 = vrot.slane %v1429, %v1491
    %v1493 = vlaneseq
    %v1494 = vshrl.u32 %v1493, 7
    %v1495 = vsub.s32 %v1440, %v1494
    %v1496 = vrot.slane %v1432, %v1495
    %v1497 = vlaneseq
    %v1498 = vshrl.u32 %v1497, 7
    %v1499 = vsub.s32 %v1440, %v1498
    %v1500 = vrot.slane %v1435, %v1499
    %v1501 = vlaneseq
    %v1502 = vshrl.u32 %v1501, 7
    %v1503 = vsub.s32 %v1440, %v1502
    %v1504 = vrot.slane %v1438, %v1503
    %v1505 = vsel %vm697, %v1448, %v1444
    %v1506 = vsel %vm700, %v1452, %v1505
    %v1507 = vsel %vm703, %v1456, %v1506
    %v1508 = vsel %vm706, %v1460, %v1507
    %v1509 = vsel %vm709, %v1464, %v1508
    %v1510 = vsel %vm712, %v1468, %v1509
    %v1511 = vsel %vm715, %v1472, %v1510
    %v1512 = vsel %vm697, %v1480, %v1476
    %v1513 = vsel %vm700, %v1484, %v1512
    %v1514 = vsel %vm703, %v1488, %v1513
    %v1515 = vsel %vm706, %v1492, %v1514
    %v1516 = vsel %vm709, %v1496, %v1515
    %v1517 = vsel %vm712, %v1500, %v1516
    %v1518 = vsel %vm715, %v1504, %v1517
    %vm1521 = vcmask 64512
    %v1522 = vsel %vm1521, %v1511, -inf
    %1523 = vmax.xlane.f32.xlu0 %v1522
    %v1524 = vpop.xlane.xlu0 %1523
    %v1525 = vsel %vm1521, %v1518, -inf
    %1526 = vmax.xlane.f32.xlu0 %v1525
    %v1527 = vpop.xlane.xlu0 %1526
    %v1530 = vlaneseq
    %v1531 = vshrl.u32 %v1530, 7
    %v1532 = vsub.s32 0, %v1531
    %v1533 = vrot.slane %v1524, %v1532
    %v1534 = vlaneseq
    %v1535 = vshrl.u32 %v1534, 7
    %v1536 = vsub.s32 1, %v1535
    %v1537 = vrot.slane %v1524, %v1536
    %v1538 = vlaneseq
    %v1539 = vshrl.u32 %v1538, 7
    %v1540 = vsub.s32 2, %v1539
    %v1541 = vrot.slane %v1524, %v1540
    %v1542 = vlaneseq
    %v1543 = vshrl.u32 %v1542, 7
    %v1544 = vsub.s32 3, %v1543
    %v1545 = vrot.slane %v1524, %v1544
    %v1546 = vlaneseq
    %v1547 = vshrl.u32 %v1546, 7
    %v1548 = vsub.s32 4, %v1547
    %v1549 = vrot.slane %v1524, %v1548
    %v1550 = vlaneseq
    %v1551 = vshrl.u32 %v1550, 7
    %v1552 = vsub.s32 5, %v1551
    %v1553 = vrot.slane %v1524, %v1552
    %v1554 = vlaneseq
    %v1555 = vshrl.u32 %v1554, 7
    %v1556 = vsub.s32 6, %v1555
    %v1557 = vrot.slane %v1524, %v1556
    %v1558 = vlaneseq
    %v1559 = vshrl.u32 %v1558, 7
    %v1560 = vsub.s32 7, %v1559
    %v1561 = vrot.slane %v1524, %v1560
    %v1562 = vlaneseq
    %v1563 = vshrl.u32 %v1562, 7
    %v1564 = vsub.s32 0, %v1563
    %v1565 = vrot.slane %v1527, %v1564
    %v1566 = vlaneseq
    %v1567 = vshrl.u32 %v1566, 7
    %v1568 = vsub.s32 1, %v1567
    %v1569 = vrot.slane %v1527, %v1568
    %v1570 = vlaneseq
    %v1571 = vshrl.u32 %v1570, 7
    %v1572 = vsub.s32 2, %v1571
    %v1573 = vrot.slane %v1527, %v1572
    %v1574 = vlaneseq
    %v1575 = vshrl.u32 %v1574, 7
    %v1576 = vsub.s32 3, %v1575
    %v1577 = vrot.slane %v1527, %v1576
    %v1578 = vlaneseq
    %v1579 = vshrl.u32 %v1578, 7
    %v1580 = vsub.s32 4, %v1579
    %v1581 = vrot.slane %v1527, %v1580
    %v1582 = vlaneseq
    %v1583 = vshrl.u32 %v1582, 7
    %v1584 = vsub.s32 5, %v1583
    %v1585 = vrot.slane %v1527, %v1584
    %v1586 = vlaneseq
    %v1587 = vshrl.u32 %v1586, 7
    %v1588 = vsub.s32 6, %v1587
    %v1589 = vrot.slane %v1527, %v1588
    %v1590 = vlaneseq
    %v1591 = vshrl.u32 %v1590, 7
    %v1592 = vsub.s32 7, %v1591
    %v1593 = vrot.slane %v1527, %v1592
    %v1610 = vsub.f32 %v1215, %v1533
    %v1611 = vsub.f32 %v1216, %v1537
    %v1612 = vsub.f32 %v1217, %v1541
    %v1613 = vsub.f32 %v1218, %v1545
    %v1614 = vsub.f32 %v1219, %v1549
    %v1615 = vsub.f32 %v1220, %v1553
    %v1616 = vsub.f32 %v1221, %v1557
    %v1617 = vsub.f32 %v1222, %v1561
    %v1618 = vsub.f32 %v1223, %v1565
    %v1619 = vsub.f32 %v1224, %v1569
    %v1620 = vsub.f32 %v1225, %v1573
    %v1621 = vsub.f32 %v1226, %v1577
    %v1622 = vsub.f32 %v1227, %v1581
    %v1623 = vsub.f32 %v1228, %v1585
    %v1624 = vsub.f32 %v1229, %v1589
    %v1625 = vsub.f32 %v1230, %v1593
    %v1626 = vmul.f32 %v1610, 1.442695
    %v1627 = vpow.pop %v1626
    %v1628 = vmul.f32 %v1611, 1.442695
    %v1629 = vpow.pop %v1628
    %v1630 = vmul.f32 %v1612, 1.442695
    %v1631 = vpow.pop %v1630
    %v1632 = vmul.f32 %v1613, 1.442695
    %v1633 = vpow.pop %v1632
    %v1634 = vmul.f32 %v1614, 1.442695
    %v1635 = vpow.pop %v1634
    %v1636 = vmul.f32 %v1615, 1.442695
    %v1637 = vpow.pop %v1636
    %v1638 = vmul.f32 %v1616, 1.442695
    %v1639 = vpow.pop %v1638
    %v1640 = vmul.f32 %v1617, 1.442695
    %v1641 = vpow.pop %v1640
    %v1642 = vmul.f32 %v1618, 1.442695
    %v1643 = vpow.pop %v1642
    %v1644 = vmul.f32 %v1619, 1.442695
    %v1645 = vpow.pop %v1644
    %v1646 = vmul.f32 %v1620, 1.442695
    %v1647 = vpow.pop %v1646
    %v1648 = vmul.f32 %v1621, 1.442695
    %v1649 = vpow.pop %v1648
    %v1650 = vmul.f32 %v1622, 1.442695
    %v1651 = vpow.pop %v1650
    %v1652 = vmul.f32 %v1623, 1.442695
    %v1653 = vpow.pop %v1652
    %v1654 = vmul.f32 %v1624, 1.442695
    %v1655 = vpow.pop %v1654
    %v1656 = vmul.f32 %v1625, 1.442695
    %v1657 = vpow.pop %v1656
    %1674 = vset.pattern.permute.xlu0 0
    %1675 = vperm.xlu0 %1674, %v1627
    %v1676 = vpop.permute.xlu0 %1675
    %1677 = vset.pattern.permute.xlu0 0
    %1678 = vperm.xlu0 %1677, %v1629
    %v1679 = vpop.permute.xlu0 %1678
    %1680 = vset.pattern.permute.xlu0 0
    %1681 = vperm.xlu0 %1680, %v1631
    %v1682 = vpop.permute.xlu0 %1681
    %1683 = vset.pattern.permute.xlu0 0
    %1684 = vperm.xlu0 %1683, %v1633
    %v1685 = vpop.permute.xlu0 %1684
    %1686 = vset.pattern.permute.xlu0 0
    %1687 = vperm.xlu0 %1686, %v1635
    %v1688 = vpop.permute.xlu0 %1687
    %1689 = vset.pattern.permute.xlu0 0
    %1690 = vperm.xlu0 %1689, %v1637
    %v1691 = vpop.permute.xlu0 %1690
    %1692 = vset.pattern.permute.xlu0 0
    %1693 = vperm.xlu0 %1692, %v1639
    %v1694 = vpop.permute.xlu0 %1693
    %1695 = vset.pattern.permute.xlu0 0
    %1696 = vperm.xlu0 %1695, %v1641
    %v1697 = vpop.permute.xlu0 %1696
    %1698 = vset.pattern.permute.xlu0 0
    %1699 = vperm.xlu0 %1698, %v1643
    %v1700 = vpop.permute.xlu0 %1699
    %1701 = vset.pattern.permute.xlu0 0
    %1702 = vperm.xlu0 %1701, %v1645
    %v1703 = vpop.permute.xlu0 %1702
    %1704 = vset.pattern.permute.xlu0 0
    %1705 = vperm.xlu0 %1704, %v1647
    %v1706 = vpop.permute.xlu0 %1705
    %1707 = vset.pattern.permute.xlu0 0
    %1708 = vperm.xlu0 %1707, %v1649
    %v1709 = vpop.permute.xlu0 %1708
    %1710 = vset.pattern.permute.xlu0 0
    %1711 = vperm.xlu0 %1710, %v1651
    %v1712 = vpop.permute.xlu0 %1711
    %1713 = vset.pattern.permute.xlu0 0
    %1714 = vperm.xlu0 %1713, %v1653
    %v1715 = vpop.permute.xlu0 %1714
    %1716 = vset.pattern.permute.xlu0 0
    %1717 = vperm.xlu0 %1716, %v1655
    %v1718 = vpop.permute.xlu0 %1717
    %1719 = vset.pattern.permute.xlu0 0
    %1720 = vperm.xlu0 %1719, %v1657
    %v1721 = vpop.permute.xlu0 %1720
    %v1722 = vlaneseq
    %v1723 = vshrl.u32 %v1722, 7
    %v1724 = vsub.s32 %v1440, %v1723
    %v1725 = vrot.slane %v1676, %v1724
    %v1726 = vlaneseq
    %v1727 = vshrl.u32 %v1726, 7
    %v1728 = vsub.s32 %v1440, %v1727
    %v1729 = vrot.slane %v1679, %v1728
    %v1730 = vlaneseq
    %v1731 = vshrl.u32 %v1730, 7
    %v1732 = vsub.s32 %v1440, %v1731
    %v1733 = vrot.slane %v1682, %v1732
    %v1734 = vlaneseq
    %v1735 = vshrl.u32 %v1734, 7
    %v1736 = vsub.s32 %v1440, %v1735
    %v1737 = vrot.slane %v1685, %v1736
    %v1738 = vlaneseq
    %v1739 = vshrl.u32 %v1738, 7
    %v1740 = vsub.s32 %v1440, %v1739
    %v1741 = vrot.slane %v1688, %v1740
    %v1742 = vlaneseq
    %v1743 = vshrl.u32 %v1742, 7
    %v1744 = vsub.s32 %v1440, %v1743
    %v1745 = vrot.slane %v1691, %v1744
    %v1746 = vlaneseq
    %v1747 = vshrl.u32 %v1746, 7
    %v1748 = vsub.s32 %v1440, %v1747
    %v1749 = vrot.slane %v1694, %v1748
    %v1750 = vlaneseq
    %v1751 = vshrl.u32 %v1750, 7
    %v1752 = vsub.s32 %v1440, %v1751
    %v1753 = vrot.slane %v1697, %v1752
    %v1754 = vlaneseq
    %v1755 = vshrl.u32 %v1754, 7
    %v1756 = vsub.s32 %v1440, %v1755
    %v1757 = vrot.slane %v1700, %v1756
    %v1758 = vlaneseq
    %v1759 = vshrl.u32 %v1758, 7
    %v1760 = vsub.s32 %v1440, %v1759
    %v1761 = vrot.slane %v1703, %v1760
    %v1762 = vlaneseq
    %v1763 = vshrl.u32 %v1762, 7
    %v1764 = vsub.s32 %v1440, %v1763
    %v1765 = vrot.slane %v1706, %v1764
    %v1766 = vlaneseq
    %v1767 = vshrl.u32 %v1766, 7
    %v1768 = vsub.s32 %v1440, %v1767
    %v1769 = vrot.slane %v1709, %v1768
    %v1770 = vlaneseq
    %v1771 = vshrl.u32 %v1770, 7
    %v1772 = vsub.s32 %v1440, %v1771
    %v1773 = vrot.slane %v1712, %v1772
    %v1774 = vlaneseq
    %v1775 = vshrl.u32 %v1774, 7
    %v1776 = vsub.s32 %v1440, %v1775
    %v1777 = vrot.slane %v1715, %v1776
    %v1778 = vlaneseq
    %v1779 = vshrl.u32 %v1778, 7
    %v1780 = vsub.s32 %v1440, %v1779
    %v1781 = vrot.slane %v1718, %v1780
    %v1782 = vlaneseq
    %v1783 = vshrl.u32 %v1782, 7
    %v1784 = vsub.s32 %v1440, %v1783
    %v1785 = vrot.slane %v1721, %v1784
    %v1786 = vsel %vm697, %v1729, %v1725
    %v1787 = vsel %vm700, %v1733, %v1786
    %v1788 = vsel %vm703, %v1737, %v1787
    %v1789 = vsel %vm706, %v1741, %v1788
    %v1790 = vsel %vm709, %v1745, %v1789
    %v1791 = vsel %vm712, %v1749, %v1790
    %v1792 = vsel %vm715, %v1753, %v1791
    %v1793 = vsel %vm697, %v1761, %v1757
    %v1794 = vsel %vm700, %v1765, %v1793
    %v1795 = vsel %vm703, %v1769, %v1794
    %v1796 = vsel %vm706, %v1773, %v1795
    %v1797 = vsel %vm709, %v1777, %v1796
    %v1798 = vsel %vm712, %v1781, %v1797
    %v1799 = vsel %vm715, %v1785, %v1798
    %v1802 = vsel %vm1521, %v1792, 0.0
    %1803 = vadd.xlane.f32.xlu0 %v1802
    %v1804 = vpop.xlane.xlu0 %1803
    %v1805 = vsel %vm1521, %v1799, 0.0
    %1806 = vadd.xlane.f32.xlu0 %v1805
    %v1807 = vpop.xlane.xlu0 %1806
    %v1808 = vrcp.pop %v1804
    %v1809 = vrcp.pop %v1807
    %v1812 = vlaneseq
    %v1813 = vshrl.u32 %v1812, 7
    %v1814 = vsub.s32 0, %v1813
    %v1815 = vrot.slane %v1808, %v1814
    %v1816 = vlaneseq
    %v1817 = vshrl.u32 %v1816, 7
    %v1818 = vsub.s32 1, %v1817
    %v1819 = vrot.slane %v1808, %v1818
    %v1820 = vlaneseq
    %v1821 = vshrl.u32 %v1820, 7
    %v1822 = vsub.s32 2, %v1821
    %v1823 = vrot.slane %v1808, %v1822
    %v1824 = vlaneseq
    %v1825 = vshrl.u32 %v1824, 7
    %v1826 = vsub.s32 3, %v1825
    %v1827 = vrot.slane %v1808, %v1826
    %v1828 = vlaneseq
    %v1829 = vshrl.u32 %v1828, 7
    %v1830 = vsub.s32 4, %v1829
    %v1831 = vrot.slane %v1808, %v1830
    %v1832 = vlaneseq
    %v1833 = vshrl.u32 %v1832, 7
    %v1834 = vsub.s32 5, %v1833
    %v1835 = vrot.slane %v1808, %v1834
    %v1836 = vlaneseq
    %v1837 = vshrl.u32 %v1836, 7
    %v1838 = vsub.s32 6, %v1837
    %v1839 = vrot.slane %v1808, %v1838
    %v1840 = vlaneseq
    %v1841 = vshrl.u32 %v1840, 7
    %v1842 = vsub.s32 7, %v1841
    %v1843 = vrot.slane %v1808, %v1842
    %v1844 = vlaneseq
    %v1845 = vshrl.u32 %v1844, 7
    %v1846 = vsub.s32 0, %v1845
    %v1847 = vrot.slane %v1809, %v1846
    %v1848 = vlaneseq
    %v1849 = vshrl.u32 %v1848, 7
    %v1850 = vsub.s32 1, %v1849
    %v1851 = vrot.slane %v1809, %v1850
    %v1852 = vlaneseq
    %v1853 = vshrl.u32 %v1852, 7
    %v1854 = vsub.s32 2, %v1853
    %v1855 = vrot.slane %v1809, %v1854
    %v1856 = vlaneseq
    %v1857 = vshrl.u32 %v1856, 7
    %v1858 = vsub.s32 3, %v1857
    %v1859 = vrot.slane %v1809, %v1858
    %v1860 = vlaneseq
    %v1861 = vshrl.u32 %v1860, 7
    %v1862 = vsub.s32 4, %v1861
    %v1863 = vrot.slane %v1809, %v1862
    %v1864 = vlaneseq
    %v1865 = vshrl.u32 %v1864, 7
    %v1866 = vsub.s32 5, %v1865
    %v1867 = vrot.slane %v1809, %v1866
    %v1868 = vlaneseq
    %v1869 = vshrl.u32 %v1868, 7
    %v1870 = vsub.s32 6, %v1869
    %v1871 = vrot.slane %v1809, %v1870
    %v1872 = vlaneseq
    %v1873 = vshrl.u32 %v1872, 7
    %v1874 = vsub.s32 7, %v1873
    %v1875 = vrot.slane %v1809, %v1874
    %v1892 = vmul.f32 %v1627, %v1815
    %v1893 = vmul.f32 %v1629, %v1819
    %v1894 = vmul.f32 %v1631, %v1823
    %v1895 = vmul.f32 %v1633, %v1827
    %v1896 = vmul.f32 %v1635, %v1831
    %v1897 = vmul.f32 %v1637, %v1835
    %v1898 = vmul.f32 %v1639, %v1839
    %v1899 = vmul.f32 %v1641, %v1843
    %v1900 = vmul.f32 %v1643, %v1847
    %v1901 = vmul.f32 %v1645, %v1851
    %v1902 = vmul.f32 %v1647, %v1855
    %v1903 = vmul.f32 %v1649, %v1859
    %v1904 = vmul.f32 %v1651, %v1863
    %v1905 = vmul.f32 %v1653, %v1867
    %v1906 = vmul.f32 %v1655, %v1871
    %v1907 = vmul.f32 %v1657, %v1875
    %1924 = vset.pattern.permute.xlu0 0
    %1925 = vperm.xlu0 %1924, %v1359
    %v1926 = vpop.permute.xlu0 %1925
    %1927 = vset.pattern.permute.xlu0 0
    %1928 = vperm.xlu0 %1927, %v1360
    %v1929 = vpop.permute.xlu0 %1928
    %1930 = vset.pattern.permute.xlu0 0
    %1931 = vperm.xlu0 %1930, %v1361
    %v1932 = vpop.permute.xlu0 %1931
    %1933 = vset.pattern.permute.xlu0 0
    %1934 = vperm.xlu0 %1933, %v1362
    %v1935 = vpop.permute.xlu0 %1934
    %1936 = vset.pattern.permute.xlu0 0
    %1937 = vperm.xlu0 %1936, %v1363
    %v1938 = vpop.permute.xlu0 %1937
    %1939 = vset.pattern.permute.xlu0 0
    %1940 = vperm.xlu0 %1939, %v1364
    %v1941 = vpop.permute.xlu0 %1940
    %1942 = vset.pattern.permute.xlu0 0
    %1943 = vperm.xlu0 %1942, %v1365
    %v1944 = vpop.permute.xlu0 %1943
    %1945 = vset.pattern.permute.xlu0 0
    %1946 = vperm.xlu0 %1945, %v1366
    %v1947 = vpop.permute.xlu0 %1946
    %1948 = vset.pattern.permute.xlu0 0
    %1949 = vperm.xlu0 %1948, %v1367
    %v1950 = vpop.permute.xlu0 %1949
    %1951 = vset.pattern.permute.xlu0 0
    %1952 = vperm.xlu0 %1951, %v1368
    %v1953 = vpop.permute.xlu0 %1952
    %1954 = vset.pattern.permute.xlu0 0
    %1955 = vperm.xlu0 %1954, %v1369
    %v1956 = vpop.permute.xlu0 %1955
    %1957 = vset.pattern.permute.xlu0 0
    %1958 = vperm.xlu0 %1957, %v1370
    %v1959 = vpop.permute.xlu0 %1958
    %1960 = vset.pattern.permute.xlu0 0
    %1961 = vperm.xlu0 %1960, %v1371
    %v1962 = vpop.permute.xlu0 %1961
    %1963 = vset.pattern.permute.xlu0 0
    %1964 = vperm.xlu0 %1963, %v1372
    %v1965 = vpop.permute.xlu0 %1964
    %1966 = vset.pattern.permute.xlu0 0
    %1967 = vperm.xlu0 %1966, %v1373
    %v1968 = vpop.permute.xlu0 %1967
    %1969 = vset.pattern.permute.xlu0 0
    %1970 = vperm.xlu0 %1969, %v1374
    %v1971 = vpop.permute.xlu0 %1970
    %v1972 = vlaneseq
    %v1973 = vshrl.u32 %v1972, 7
    %v1974 = vsub.s32 %v1440, %v1973
    %v1975 = vrot.slane %v1926, %v1974
    %v1976 = vlaneseq
    %v1977 = vshrl.u32 %v1976, 7
    %v1978 = vsub.s32 %v1440, %v1977
    %v1979 = vrot.slane %v1929, %v1978
    %v1980 = vlaneseq
    %v1981 = vshrl.u32 %v1980, 7
    %v1982 = vsub.s32 %v1440, %v1981
    %v1983 = vrot.slane %v1932, %v1982
    %v1984 = vlaneseq
    %v1985 = vshrl.u32 %v1984, 7
    %v1986 = vsub.s32 %v1440, %v1985
    %v1987 = vrot.slane %v1935, %v1986
    %v1988 = vlaneseq
    %v1989 = vshrl.u32 %v1988, 7
    %v1990 = vsub.s32 %v1440, %v1989
    %v1991 = vrot.slane %v1938, %v1990
    %v1992 = vlaneseq
    %v1993 = vshrl.u32 %v1992, 7
    %v1994 = vsub.s32 %v1440, %v1993
    %v1995 = vrot.slane %v1941, %v1994
    %v1996 = vlaneseq
    %v1997 = vshrl.u32 %v1996, 7
    %v1998 = vsub.s32 %v1440, %v1997
    %v1999 = vrot.slane %v1944, %v1998
    %v2000 = vlaneseq
    %v2001 = vshrl.u32 %v2000, 7
    %v2002 = vsub.s32 %v1440, %v2001
    %v2003 = vrot.slane %v1947, %v2002
    %v2004 = vlaneseq
    %v2005 = vshrl.u32 %v2004, 7
    %v2006 = vsub.s32 %v1440, %v2005
    %v2007 = vrot.slane %v1950, %v2006
    %v2008 = vlaneseq
    %v2009 = vshrl.u32 %v2008, 7
    %v2010 = vsub.s32 %v1440, %v2009
    %v2011 = vrot.slane %v1953, %v2010
    %v2012 = vlaneseq
    %v2013 = vshrl.u32 %v2012, 7
    %v2014 = vsub.s32 %v1440, %v2013
    %v2015 = vrot.slane %v1956, %v2014
    %v2016 = vlaneseq
    %v2017 = vshrl.u32 %v2016, 7
    %v2018 = vsub.s32 %v1440, %v2017
    %v2019 = vrot.slane %v1959, %v2018
    %v2020 = vlaneseq
    %v2021 = vshrl.u32 %v2020, 7
    %v2022 = vsub.s32 %v1440, %v2021
    %v2023 = vrot.slane %v1962, %v2022
    %v2024 = vlaneseq
    %v2025 = vshrl.u32 %v2024, 7
    %v2026 = vsub.s32 %v1440, %v2025
    %v2027 = vrot.slane %v1965, %v2026
    %v2028 = vlaneseq
    %v2029 = vshrl.u32 %v2028, 7
    %v2030 = vsub.s32 %v1440, %v2029
    %v2031 = vrot.slane %v1968, %v2030
    %v2032 = vlaneseq
    %v2033 = vshrl.u32 %v2032, 7
    %v2034 = vsub.s32 %v1440, %v2033
    %v2035 = vrot.slane %v1971, %v2034
    %v2036 = vsel %vm697, %v1979, %v1975
    %v2037 = vsel %vm700, %v1983, %v2036
    %v2038 = vsel %vm703, %v1987, %v2037
    %v2039 = vsel %vm706, %v1991, %v2038
    %v2040 = vsel %vm709, %v1995, %v2039
    %v2041 = vsel %vm712, %v1999, %v2040
    %v2042 = vsel %vm715, %v2003, %v2041
    %v2043 = vsel %vm697, %v2011, %v2007
    %v2044 = vsel %vm700, %v2015, %v2043
    %v2045 = vsel %vm703, %v2019, %v2044
    %v2046 = vsel %vm706, %v2023, %v2045
    %v2047 = vsel %vm709, %v2027, %v2046
    %v2048 = vsel %vm712, %v2031, %v2047
    %v2049 = vsel %vm715, %v2035, %v2048
    %v2052 = vsel %vm1521, %v2042, -inf
    %2053 = vmax.xlane.f32.xlu0 %v2052
    %v2054 = vpop.xlane.xlu0 %2053
    %v2055 = vsel %vm1521, %v2049, -inf
    %2056 = vmax.xlane.f32.xlu0 %v2055
    %v2057 = vpop.xlane.xlu0 %2056
    %v2060 = vlaneseq
    %v2061 = vshrl.u32 %v2060, 7
    %v2062 = vsub.s32 0, %v2061
    %v2063 = vrot.slane %v2054, %v2062
    %v2064 = vlaneseq
    %v2065 = vshrl.u32 %v2064, 7
    %v2066 = vsub.s32 1, %v2065
    %v2067 = vrot.slane %v2054, %v2066
    %v2068 = vlaneseq
    %v2069 = vshrl.u32 %v2068, 7
    %v2070 = vsub.s32 2, %v2069
    %v2071 = vrot.slane %v2054, %v2070
    %v2072 = vlaneseq
    %v2073 = vshrl.u32 %v2072, 7
    %v2074 = vsub.s32 3, %v2073
    %v2075 = vrot.slane %v2054, %v2074
    %v2076 = vlaneseq
    %v2077 = vshrl.u32 %v2076, 7
    %v2078 = vsub.s32 4, %v2077
    %v2079 = vrot.slane %v2054, %v2078
    %v2080 = vlaneseq
    %v2081 = vshrl.u32 %v2080, 7
    %v2082 = vsub.s32 5, %v2081
    %v2083 = vrot.slane %v2054, %v2082
    %v2084 = vlaneseq
    %v2085 = vshrl.u32 %v2084, 7
    %v2086 = vsub.s32 6, %v2085
    %v2087 = vrot.slane %v2054, %v2086
    %v2088 = vlaneseq
    %v2089 = vshrl.u32 %v2088, 7
    %v2090 = vsub.s32 7, %v2089
    %v2091 = vrot.slane %v2054, %v2090
    %v2092 = vlaneseq
    %v2093 = vshrl.u32 %v2092, 7
    %v2094 = vsub.s32 0, %v2093
    %v2095 = vrot.slane %v2057, %v2094
    %v2096 = vlaneseq
    %v2097 = vshrl.u32 %v2096, 7
    %v2098 = vsub.s32 1, %v2097
    %v2099 = vrot.slane %v2057, %v2098
    %v2100 = vlaneseq
    %v2101 = vshrl.u32 %v2100, 7
    %v2102 = vsub.s32 2, %v2101
    %v2103 = vrot.slane %v2057, %v2102
    %v2104 = vlaneseq
    %v2105 = vshrl.u32 %v2104, 7
    %v2106 = vsub.s32 3, %v2105
    %v2107 = vrot.slane %v2057, %v2106
    %v2108 = vlaneseq
    %v2109 = vshrl.u32 %v2108, 7
    %v2110 = vsub.s32 4, %v2109
    %v2111 = vrot.slane %v2057, %v2110
    %v2112 = vlaneseq
    %v2113 = vshrl.u32 %v2112, 7
    %v2114 = vsub.s32 5, %v2113
    %v2115 = vrot.slane %v2057, %v2114
    %v2116 = vlaneseq
    %v2117 = vshrl.u32 %v2116, 7
    %v2118 = vsub.s32 6, %v2117
    %v2119 = vrot.slane %v2057, %v2118
    %v2120 = vlaneseq
    %v2121 = vshrl.u32 %v2120, 7
    %v2122 = vsub.s32 7, %v2121
    %v2123 = vrot.slane %v2057, %v2122
    %v2140 = vsub.f32 %v1359, %v2063
    %v2141 = vsub.f32 %v1360, %v2067
    %v2142 = vsub.f32 %v1361, %v2071
    %v2143 = vsub.f32 %v1362, %v2075
    %v2144 = vsub.f32 %v1363, %v2079
    %v2145 = vsub.f32 %v1364, %v2083
    %v2146 = vsub.f32 %v1365, %v2087
    %v2147 = vsub.f32 %v1366, %v2091
    %v2148 = vsub.f32 %v1367, %v2095
    %v2149 = vsub.f32 %v1368, %v2099
    %v2150 = vsub.f32 %v1369, %v2103
    %v2151 = vsub.f32 %v1370, %v2107
    %v2152 = vsub.f32 %v1371, %v2111
    %v2153 = vsub.f32 %v1372, %v2115
    %v2154 = vsub.f32 %v1373, %v2119
    %v2155 = vsub.f32 %v1374, %v2123
    %v2156 = vmul.f32 %v2140, 1.442695
    %v2157 = vpow.pop %v2156
    %v2158 = vmul.f32 %v2141, 1.442695
    %v2159 = vpow.pop %v2158
    %v2160 = vmul.f32 %v2142, 1.442695
    %v2161 = vpow.pop %v2160
    %v2162 = vmul.f32 %v2143, 1.442695
    %v2163 = vpow.pop %v2162
    %v2164 = vmul.f32 %v2144, 1.442695
    %v2165 = vpow.pop %v2164
    %v2166 = vmul.f32 %v2145, 1.442695
    %v2167 = vpow.pop %v2166
    %v2168 = vmul.f32 %v2146, 1.442695
    %v2169 = vpow.pop %v2168
    %v2170 = vmul.f32 %v2147, 1.442695
    %v2171 = vpow.pop %v2170
    %v2172 = vmul.f32 %v2148, 1.442695
    %v2173 = vpow.pop %v2172
    %v2174 = vmul.f32 %v2149, 1.442695
    %v2175 = vpow.pop %v2174
    %v2176 = vmul.f32 %v2150, 1.442695
    %v2177 = vpow.pop %v2176
    %v2178 = vmul.f32 %v2151, 1.442695
    %v2179 = vpow.pop %v2178
    %v2180 = vmul.f32 %v2152, 1.442695
    %v2181 = vpow.pop %v2180
    %v2182 = vmul.f32 %v2153, 1.442695
    %v2183 = vpow.pop %v2182
    %v2184 = vmul.f32 %v2154, 1.442695
    %v2185 = vpow.pop %v2184
    %v2186 = vmul.f32 %v2155, 1.442695
    %v2187 = vpow.pop %v2186
    %2204 = vset.pattern.permute.xlu0 0
    %2205 = vperm.xlu0 %2204, %v2157
    %v2206 = vpop.permute.xlu0 %2205
    %2207 = vset.pattern.permute.xlu0 0
    %2208 = vperm.xlu0 %2207, %v2159
    %v2209 = vpop.permute.xlu0 %2208
    %2210 = vset.pattern.permute.xlu0 0
    %2211 = vperm.xlu0 %2210, %v2161
    %v2212 = vpop.permute.xlu0 %2211
    %2213 = vset.pattern.permute.xlu0 0
    %2214 = vperm.xlu0 %2213, %v2163
    %v2215 = vpop.permute.xlu0 %2214
    %2216 = vset.pattern.permute.xlu0 0
    %2217 = vperm.xlu0 %2216, %v2165
    %v2218 = vpop.permute.xlu0 %2217
    %2219 = vset.pattern.permute.xlu0 0
    %2220 = vperm.xlu0 %2219, %v2167
    %v2221 = vpop.permute.xlu0 %2220
    %2222 = vset.pattern.permute.xlu0 0
    %2223 = vperm.xlu0 %2222, %v2169
    %v2224 = vpop.permute.xlu0 %2223
    %2225 = vset.pattern.permute.xlu0 0
    %2226 = vperm.xlu0 %2225, %v2171
    %v2227 = vpop.permute.xlu0 %2226
    %2228 = vset.pattern.permute.xlu0 0
    %2229 = vperm.xlu0 %2228, %v2173
    %v2230 = vpop.permute.xlu0 %2229
    %2231 = vset.pattern.permute.xlu0 0
    %2232 = vperm.xlu0 %2231, %v2175
    %v2233 = vpop.permute.xlu0 %2232
    %2234 = vset.pattern.permute.xlu0 0
    %2235 = vperm.xlu0 %2234, %v2177
    %v2236 = vpop.permute.xlu0 %2235
    %2237 = vset.pattern.permute.xlu0 0
    %2238 = vperm.xlu0 %2237, %v2179
    %v2239 = vpop.permute.xlu0 %2238
    %2240 = vset.pattern.permute.xlu0 0
    %2241 = vperm.xlu0 %2240, %v2181
    %v2242 = vpop.permute.xlu0 %2241
    %2243 = vset.pattern.permute.xlu0 0
    %2244 = vperm.xlu0 %2243, %v2183
    %v2245 = vpop.permute.xlu0 %2244
    %2246 = vset.pattern.permute.xlu0 0
    %2247 = vperm.xlu0 %2246, %v2185
    %v2248 = vpop.permute.xlu0 %2247
    %2249 = vset.pattern.permute.xlu0 0
    %2250 = vperm.xlu0 %2249, %v2187
    %v2251 = vpop.permute.xlu0 %2250
    %v2252 = vlaneseq
    %v2253 = vshrl.u32 %v2252, 7
    %v2254 = vsub.s32 %v1440, %v2253
    %v2255 = vrot.slane %v2206, %v2254
    %v2256 = vlaneseq
    %v2257 = vshrl.u32 %v2256, 7
    %v2258 = vsub.s32 %v1440, %v2257
    %v2259 = vrot.slane %v2209, %v2258
    %v2260 = vlaneseq
    %v2261 = vshrl.u32 %v2260, 7
    %v2262 = vsub.s32 %v1440, %v2261
    %v2263 = vrot.slane %v2212, %v2262
    %v2264 = vlaneseq
    %v2265 = vshrl.u32 %v2264, 7
    %v2266 = vsub.s32 %v1440, %v2265
    %v2267 = vrot.slane %v2215, %v2266
    %v2268 = vlaneseq
    %v2269 = vshrl.u32 %v2268, 7
    %v2270 = vsub.s32 %v1440, %v2269
    %v2271 = vrot.slane %v2218, %v2270
    %v2272 = vlaneseq
    %v2273 = vshrl.u32 %v2272, 7
    %v2274 = vsub.s32 %v1440, %v2273
    %v2275 = vrot.slane %v2221, %v2274
    %v2276 = vlaneseq
    %v2277 = vshrl.u32 %v2276, 7
    %v2278 = vsub.s32 %v1440, %v2277
    %v2279 = vrot.slane %v2224, %v2278
    %v2280 = vlaneseq
    %v2281 = vshrl.u32 %v2280, 7
    %v2282 = vsub.s32 %v1440, %v2281
    %v2283 = vrot.slane %v2227, %v2282
    %v2284 = vlaneseq
    %v2285 = vshrl.u32 %v2284, 7
    %v2286 = vsub.s32 %v1440, %v2285
    %v2287 = vrot.slane %v2230, %v2286
    %v2288 = vlaneseq
    %v2289 = vshrl.u32 %v2288, 7
    %v2290 = vsub.s32 %v1440, %v2289
    %v2291 = vrot.slane %v2233, %v2290
    %v2292 = vlaneseq
    %v2293 = vshrl.u32 %v2292, 7
    %v2294 = vsub.s32 %v1440, %v2293
    %v2295 = vrot.slane %v2236, %v2294
    %v2296 = vlaneseq
    %v2297 = vshrl.u32 %v2296, 7
    %v2298 = vsub.s32 %v1440, %v2297
    %v2299 = vrot.slane %v2239, %v2298
    %v2300 = vlaneseq
    %v2301 = vshrl.u32 %v2300, 7
    %v2302 = vsub.s32 %v1440, %v2301
    %v2303 = vrot.slane %v2242, %v2302
    %v2304 = vlaneseq
    %v2305 = vshrl.u32 %v2304, 7
    %v2306 = vsub.s32 %v1440, %v2305
    %v2307 = vrot.slane %v2245, %v2306
    %v2308 = vlaneseq
    %v2309 = vshrl.u32 %v2308, 7
    %v2310 = vsub.s32 %v1440, %v2309
    %v2311 = vrot.slane %v2248, %v2310
    %v2312 = vlaneseq
    %v2313 = vshrl.u32 %v2312, 7
    %v2314 = vsub.s32 %v1440, %v2313
    %v2315 = vrot.slane %v2251, %v2314
    %v2316 = vsel %vm697, %v2259, %v2255
    %v2317 = vsel %vm700, %v2263, %v2316
    %v2318 = vsel %vm703, %v2267, %v2317
    %v2319 = vsel %vm706, %v2271, %v2318
    %v2320 = vsel %vm709, %v2275, %v2319
    %v2321 = vsel %vm712, %v2279, %v2320
    %v2322 = vsel %vm715, %v2283, %v2321
    %v2323 = vsel %vm697, %v2291, %v2287
    %v2324 = vsel %vm700, %v2295, %v2323
    %v2325 = vsel %vm703, %v2299, %v2324
    %v2326 = vsel %vm706, %v2303, %v2325
    %v2327 = vsel %vm709, %v2307, %v2326
    %v2328 = vsel %vm712, %v2311, %v2327
    %v2329 = vsel %vm715, %v2315, %v2328
    %v2332 = vsel %vm1521, %v2322, 0.0
    %2333 = vadd.xlane.f32.xlu0 %v2332
    %v2334 = vpop.xlane.xlu0 %2333
    %v2335 = vsel %vm1521, %v2329, 0.0
    %2336 = vadd.xlane.f32.xlu0 %v2335
    %v2337 = vpop.xlane.xlu0 %2336
    %v2338 = vrcp.pop %v2334
    %v2339 = vrcp.pop %v2337
    %v2342 = vlaneseq
    %v2343 = vshrl.u32 %v2342, 7
    %v2344 = vsub.s32 0, %v2343
    %v2345 = vrot.slane %v2338, %v2344
    %v2346 = vlaneseq
    %v2347 = vshrl.u32 %v2346, 7
    %v2348 = vsub.s32 1, %v2347
    %v2349 = vrot.slane %v2338, %v2348
    %v2350 = vlaneseq
    %v2351 = vshrl.u32 %v2350, 7
    %v2352 = vsub.s32 2, %v2351
    %v2353 = vrot.slane %v2338, %v2352
    %v2354 = vlaneseq
    %v2355 = vshrl.u32 %v2354, 7
    %v2356 = vsub.s32 3, %v2355
    %v2357 = vrot.slane %v2338, %v2356
    %v2358 = vlaneseq
    %v2359 = vshrl.u32 %v2358, 7
    %v2360 = vsub.s32 4, %v2359
    %v2361 = vrot.slane %v2338, %v2360
    %v2362 = vlaneseq
    %v2363 = vshrl.u32 %v2362, 7
    %v2364 = vsub.s32 5, %v2363
    %v2365 = vrot.slane %v2338, %v2364
    %v2366 = vlaneseq
    %v2367 = vshrl.u32 %v2366, 7
    %v2368 = vsub.s32 6, %v2367
    %v2369 = vrot.slane %v2338, %v2368
    %v2370 = vlaneseq
    %v2371 = vshrl.u32 %v2370, 7
    %v2372 = vsub.s32 7, %v2371
    %v2373 = vrot.slane %v2338, %v2372
    %v2374 = vlaneseq
    %v2375 = vshrl.u32 %v2374, 7
    %v2376 = vsub.s32 0, %v2375
    %v2377 = vrot.slane %v2339, %v2376
    %v2378 = vlaneseq
    %v2379 = vshrl.u32 %v2378, 7
    %v2380 = vsub.s32 1, %v2379
    %v2381 = vrot.slane %v2339, %v2380
    %v2382 = vlaneseq
    %v2383 = vshrl.u32 %v2382, 7
    %v2384 = vsub.s32 2, %v2383
    %v2385 = vrot.slane %v2339, %v2384
    %v2386 = vlaneseq
    %v2387 = vshrl.u32 %v2386, 7
    %v2388 = vsub.s32 3, %v2387
    %v2389 = vrot.slane %v2339, %v2388
    %v2390 = vlaneseq
    %v2391 = vshrl.u32 %v2390, 7
    %v2392 = vsub.s32 4, %v2391
    %v2393 = vrot.slane %v2339, %v2392
    %v2394 = vlaneseq
    %v2395 = vshrl.u32 %v2394, 7
    %v2396 = vsub.s32 5, %v2395
    %v2397 = vrot.slane %v2339, %v2396
    %v2398 = vlaneseq
    %v2399 = vshrl.u32 %v2398, 7
    %v2400 = vsub.s32 6, %v2399
    %v2401 = vrot.slane %v2339, %v2400
    %v2402 = vlaneseq
    %v2403 = vshrl.u32 %v2402, 7
    %v2404 = vsub.s32 7, %v2403
    %v2405 = vrot.slane %v2339, %v2404
    %v2422 = vmul.f32 %v2157, %v2345
    %v2423 = vmul.f32 %v2159, %v2349
    %v2424 = vmul.f32 %v2161, %v2353
    %v2425 = vmul.f32 %v2163, %v2357
    %v2426 = vmul.f32 %v2165, %v2361
    %v2427 = vmul.f32 %v2167, %v2365
    %v2428 = vmul.f32 %v2169, %v2369
    %v2429 = vmul.f32 %v2171, %v2373
    %v2430 = vmul.f32 %v2173, %v2377
    %v2431 = vmul.f32 %v2175, %v2381
    %v2432 = vmul.f32 %v2177, %v2385
    %v2433 = vmul.f32 %v2179, %v2389
    %v2434 = vmul.f32 %v2181, %v2393
    %v2435 = vmul.f32 %v2183, %v2397
    %v2436 = vmul.f32 %v2185, %v2401
    %v2437 = vmul.f32 %v2187, %v2405
    %2439 = vset.pattern.permute.xlu0 0
    %2440 = vperm.xlu0 %2439, %v1892
    %v2441 = vpop.permute.xlu0 %2440
    %2444 = vset.pattern.permute.xlu0 0
    %2445 = vperm.xlu0 %2444, %v1893
    %v2446 = vpop.permute.xlu0 %2445
    %2449 = vset.pattern.permute.xlu0 0
    %2450 = vperm.xlu0 %2449, %v1894
    %v2451 = vpop.permute.xlu0 %2450
    %2454 = vset.pattern.permute.xlu0 0
    %2455 = vperm.xlu0 %2454, %v1895
    %v2456 = vpop.permute.xlu0 %2455
    %2459 = vset.pattern.permute.xlu0 0
    %2460 = vperm.xlu0 %2459, %v1896
    %v2461 = vpop.permute.xlu0 %2460
    %2464 = vset.pattern.permute.xlu0 0
    %2465 = vperm.xlu0 %2464, %v1897
    %v2466 = vpop.permute.xlu0 %2465
    %2469 = vset.pattern.permute.xlu0 0
    %2470 = vperm.xlu0 %2469, %v1898
    %v2471 = vpop.permute.xlu0 %2470
    %2474 = vset.pattern.permute.xlu0 0
    %2475 = vperm.xlu0 %2474, %v1899
    %v2476 = vpop.permute.xlu0 %2475
    %2479 = vset.pattern.permute.xlu0 0
    %2480 = vperm.xlu0 %2479, %v1900
    %v2481 = vpop.permute.xlu0 %2480
    %2484 = vset.pattern.permute.xlu0 0
    %2485 = vperm.xlu0 %2484, %v1901
    %v2486 = vpop.permute.xlu0 %2485
    %2489 = vset.pattern.permute.xlu0 0
    %2490 = vperm.xlu0 %2489, %v1902
    %v2491 = vpop.permute.xlu0 %2490
    %2494 = vset.pattern.permute.xlu0 0
    %2495 = vperm.xlu0 %2494, %v1903
    %v2496 = vpop.permute.xlu0 %2495
    %2499 = vset.pattern.permute.xlu0 0
    %2500 = vperm.xlu0 %2499, %v1904
    %v2501 = vpop.permute.xlu0 %2500
    %2504 = vset.pattern.permute.xlu0 0
    %2505 = vperm.xlu0 %2504, %v1905
    %v2506 = vpop.permute.xlu0 %2505
    %2509 = vset.pattern.permute.xlu0 0
    %2510 = vperm.xlu0 %2509, %v1906
    %v2511 = vpop.permute.xlu0 %2510
    %2514 = vset.pattern.permute.xlu0 0
    %2515 = vperm.xlu0 %2514, %v1907
    %v2516 = vpop.permute.xlu0 %2515
    %v2518 = vmul.f32 %v2441, %v628
    %v2519 = vmul.f32 %v2446, %v629
    %v2520 = vmul.f32 %v2451, %v630
    %v2521 = vmul.f32 %v2456, %v631
    %v2522 = vmul.f32 %v2461, %v632
    %v2523 = vmul.f32 %v2466, %v633
    %v2524 = vmul.f32 %v2471, %v634
    %v2525 = vmul.f32 %v2476, %v635
    %v2526 = vmul.f32 %v2481, %v636
    %v2527 = vmul.f32 %v2486, %v637
    %v2528 = vmul.f32 %v2491, %v638
    %v2529 = vmul.f32 %v2496, %v639
    %v2530 = vmul.f32 %v2501, %v640
    %v2531 = vmul.f32 %v2506, %v641
    %v2532 = vmul.f32 %v2511, %v642
    %v2533 = vmul.f32 %v2516, %v643
    %v2534 = vsel %vm1020, %v2518, 0.0
    %v2535 = vrot.slane %v2534, 4
    %v2536 = vadd.f32 %v2534, %v2535
    %v2537 = vrot.slane %v2536, 2
    %v2538 = vadd.f32 %v2536, %v2537
    %v2539 = vrot.slane %v2538, 1
    %v2540 = vadd.f32 %v2538, %v2539
    %v2541 = vsel %vm1020, %v2519, 0.0
    %v2542 = vrot.slane %v2541, 4
    %v2543 = vadd.f32 %v2541, %v2542
    %v2544 = vrot.slane %v2543, 2
    %v2545 = vadd.f32 %v2543, %v2544
    %v2546 = vrot.slane %v2545, 1
    %v2547 = vadd.f32 %v2545, %v2546
    %v2548 = vsel %vm1020, %v2520, 0.0
    %v2549 = vrot.slane %v2548, 4
    %v2550 = vadd.f32 %v2548, %v2549
    %v2551 = vrot.slane %v2550, 2
    %v2552 = vadd.f32 %v2550, %v2551
    %v2553 = vrot.slane %v2552, 1
    %v2554 = vadd.f32 %v2552, %v2553
    %v2555 = vsel %vm1020, %v2521, 0.0
    %v2556 = vrot.slane %v2555, 4
    %v2557 = vadd.f32 %v2555, %v2556
    %v2558 = vrot.slane %v2557, 2
    %v2559 = vadd.f32 %v2557, %v2558
    %v2560 = vrot.slane %v2559, 1
    %v2561 = vadd.f32 %v2559, %v2560
    %v2562 = vsel %vm1020, %v2522, 0.0
    %v2563 = vrot.slane %v2562, 4
    %v2564 = vadd.f32 %v2562, %v2563
    %v2565 = vrot.slane %v2564, 2
    %v2566 = vadd.f32 %v2564, %v2565
    %v2567 = vrot.slane %v2566, 1
    %v2568 = vadd.f32 %v2566, %v2567
    %v2569 = vsel %vm1020, %v2523, 0.0
    %v2570 = vrot.slane %v2569, 4
    %v2571 = vadd.f32 %v2569, %v2570
    %v2572 = vrot.slane %v2571, 2
    %v2573 = vadd.f32 %v2571, %v2572
    %v2574 = vrot.slane %v2573, 1
    %v2575 = vadd.f32 %v2573, %v2574
    %v2576 = vsel %vm1020, %v2524, 0.0
    %v2577 = vrot.slane %v2576, 4
    %v2578 = vadd.f32 %v2576, %v2577
    %v2579 = vrot.slane %v2578, 2
    %v2580 = vadd.f32 %v2578, %v2579
    %v2581 = vrot.slane %v2580, 1
    %v2582 = vadd.f32 %v2580, %v2581
    %v2583 = vsel %vm1020, %v2525, 0.0
    %v2584 = vrot.slane %v2583, 4
    %v2585 = vadd.f32 %v2583, %v2584
    %v2586 = vrot.slane %v2585, 2
    %v2587 = vadd.f32 %v2585, %v2586
    %v2588 = vrot.slane %v2587, 1
    %v2589 = vadd.f32 %v2587, %v2588
    %v2590 = vsel %vm1020, %v2526, 0.0
    %v2591 = vrot.slane %v2590, 4
    %v2592 = vadd.f32 %v2590, %v2591
    %v2593 = vrot.slane %v2592, 2
    %v2594 = vadd.f32 %v2592, %v2593
    %v2595 = vrot.slane %v2594, 1
    %v2596 = vadd.f32 %v2594, %v2595
    %v2597 = vsel %vm1020, %v2527, 0.0
    %v2598 = vrot.slane %v2597, 4
    %v2599 = vadd.f32 %v2597, %v2598
    %v2600 = vrot.slane %v2599, 2
    %v2601 = vadd.f32 %v2599, %v2600
    %v2602 = vrot.slane %v2601, 1
    %v2603 = vadd.f32 %v2601, %v2602
    %v2604 = vsel %vm1020, %v2528, 0.0
    %v2605 = vrot.slane %v2604, 4
    %v2606 = vadd.f32 %v2604, %v2605
    %v2607 = vrot.slane %v2606, 2
    %v2608 = vadd.f32 %v2606, %v2607
    %v2609 = vrot.slane %v2608, 1
    %v2610 = vadd.f32 %v2608, %v2609
    %v2611 = vsel %vm1020, %v2529, 0.0
    %v2612 = vrot.slane %v2611, 4
    %v2613 = vadd.f32 %v2611, %v2612
    %v2614 = vrot.slane %v2613, 2
    %v2615 = vadd.f32 %v2613, %v2614
    %v2616 = vrot.slane %v2615, 1
    %v2617 = vadd.f32 %v2615, %v2616
    %v2618 = vsel %vm1020, %v2530, 0.0
    %v2619 = vrot.slane %v2618, 4
    %v2620 = vadd.f32 %v2618, %v2619
    %v2621 = vrot.slane %v2620, 2
    %v2622 = vadd.f32 %v2620, %v2621
    %v2623 = vrot.slane %v2622, 1
    %v2624 = vadd.f32 %v2622, %v2623
    %v2625 = vsel %vm1020, %v2531, 0.0
    %v2626 = vrot.slane %v2625, 4
    %v2627 = vadd.f32 %v2625, %v2626
    %v2628 = vrot.slane %v2627, 2
    %v2629 = vadd.f32 %v2627, %v2628
    %v2630 = vrot.slane %v2629, 1
    %v2631 = vadd.f32 %v2629, %v2630
    %v2632 = vsel %vm1020, %v2532, 0.0
    %v2633 = vrot.slane %v2632, 4
    %v2634 = vadd.f32 %v2632, %v2633
    %v2635 = vrot.slane %v2634, 2
    %v2636 = vadd.f32 %v2634, %v2635
    %v2637 = vrot.slane %v2636, 1
    %v2638 = vadd.f32 %v2636, %v2637
    %v2639 = vsel %vm1020, %v2533, 0.0
    %v2640 = vrot.slane %v2639, 4
    %v2641 = vadd.f32 %v2639, %v2640
    %v2642 = vrot.slane %v2641, 2
    %v2643 = vadd.f32 %v2641, %v2642
    %v2644 = vrot.slane %v2643, 1
    %v2645 = vadd.f32 %v2643, %v2644
    %2647 = vset.pattern.permute.xlu0 0
    %2648 = vperm.xlu0 %2647, %v2422
    %v2649 = vpop.permute.xlu0 %2648
    %2652 = vset.pattern.permute.xlu0 0
    %2653 = vperm.xlu0 %2652, %v2423
    %v2654 = vpop.permute.xlu0 %2653
    %2657 = vset.pattern.permute.xlu0 0
    %2658 = vperm.xlu0 %2657, %v2424
    %v2659 = vpop.permute.xlu0 %2658
    %2662 = vset.pattern.permute.xlu0 0
    %2663 = vperm.xlu0 %2662, %v2425
    %v2664 = vpop.permute.xlu0 %2663
    %2667 = vset.pattern.permute.xlu0 0
    %2668 = vperm.xlu0 %2667, %v2426
    %v2669 = vpop.permute.xlu0 %2668
    %2672 = vset.pattern.permute.xlu0 0
    %2673 = vperm.xlu0 %2672, %v2427
    %v2674 = vpop.permute.xlu0 %2673
    %2677 = vset.pattern.permute.xlu0 0
    %2678 = vperm.xlu0 %2677, %v2428
    %v2679 = vpop.permute.xlu0 %2678
    %2682 = vset.pattern.permute.xlu0 0
    %2683 = vperm.xlu0 %2682, %v2429
    %v2684 = vpop.permute.xlu0 %2683
    %2687 = vset.pattern.permute.xlu0 0
    %2688 = vperm.xlu0 %2687, %v2430
    %v2689 = vpop.permute.xlu0 %2688
    %2692 = vset.pattern.permute.xlu0 0
    %2693 = vperm.xlu0 %2692, %v2431
    %v2694 = vpop.permute.xlu0 %2693
    %2697 = vset.pattern.permute.xlu0 0
    %2698 = vperm.xlu0 %2697, %v2432
    %v2699 = vpop.permute.xlu0 %2698
    %2702 = vset.pattern.permute.xlu0 0
    %2703 = vperm.xlu0 %2702, %v2433
    %v2704 = vpop.permute.xlu0 %2703
    %2707 = vset.pattern.permute.xlu0 0
    %2708 = vperm.xlu0 %2707, %v2434
    %v2709 = vpop.permute.xlu0 %2708
    %2712 = vset.pattern.permute.xlu0 0
    %2713 = vperm.xlu0 %2712, %v2435
    %v2714 = vpop.permute.xlu0 %2713
    %2717 = vset.pattern.permute.xlu0 0
    %2718 = vperm.xlu0 %2717, %v2436
    %v2719 = vpop.permute.xlu0 %2718
    %2722 = vset.pattern.permute.xlu0 0
    %2723 = vperm.xlu0 %2722, %v2437
    %v2724 = vpop.permute.xlu0 %2723
    %v2726 = vmul.f32 %v2649, %v628
    %v2727 = vmul.f32 %v2654, %v629
    %v2728 = vmul.f32 %v2659, %v630
    %v2729 = vmul.f32 %v2664, %v631
    %v2730 = vmul.f32 %v2669, %v632
    %v2731 = vmul.f32 %v2674, %v633
    %v2732 = vmul.f32 %v2679, %v634
    %v2733 = vmul.f32 %v2684, %v635
    %v2734 = vmul.f32 %v2689, %v636
    %v2735 = vmul.f32 %v2694, %v637
    %v2736 = vmul.f32 %v2699, %v638
    %v2737 = vmul.f32 %v2704, %v639
    %v2738 = vmul.f32 %v2709, %v640
    %v2739 = vmul.f32 %v2714, %v641
    %v2740 = vmul.f32 %v2719, %v642
    %v2741 = vmul.f32 %v2724, %v643
    %vm2742 = vcmask 1048064
    %v2743 = vsel %vm2742, %v2726, 0.0
    %v2744 = vrot.slane %v2743, 4
    %v2745 = vadd.f32 %v2743, %v2744
    %v2746 = vrot.slane %v2745, 2
    %v2747 = vadd.f32 %v2745, %v2746
    %v2748 = vrot.slane %v2747, 1
    %v2749 = vadd.f32 %v2747, %v2748
    %v2750 = vsel %vm2742, %v2727, 0.0
    %v2751 = vrot.slane %v2750, 4
    %v2752 = vadd.f32 %v2750, %v2751
    %v2753 = vrot.slane %v2752, 2
    %v2754 = vadd.f32 %v2752, %v2753
    %v2755 = vrot.slane %v2754, 1
    %v2756 = vadd.f32 %v2754, %v2755
    %v2757 = vsel %vm2742, %v2728, 0.0
    %v2758 = vrot.slane %v2757, 4
    %v2759 = vadd.f32 %v2757, %v2758
    %v2760 = vrot.slane %v2759, 2
    %v2761 = vadd.f32 %v2759, %v2760
    %v2762 = vrot.slane %v2761, 1
    %v2763 = vadd.f32 %v2761, %v2762
    %v2764 = vsel %vm2742, %v2729, 0.0
    %v2765 = vrot.slane %v2764, 4
    %v2766 = vadd.f32 %v2764, %v2765
    %v2767 = vrot.slane %v2766, 2
    %v2768 = vadd.f32 %v2766, %v2767
    %v2769 = vrot.slane %v2768, 1
    %v2770 = vadd.f32 %v2768, %v2769
    %v2771 = vsel %vm2742, %v2730, 0.0
    %v2772 = vrot.slane %v2771, 4
    %v2773 = vadd.f32 %v2771, %v2772
    %v2774 = vrot.slane %v2773, 2
    %v2775 = vadd.f32 %v2773, %v2774
    %v2776 = vrot.slane %v2775, 1
    %v2777 = vadd.f32 %v2775, %v2776
    %v2778 = vsel %vm2742, %v2731, 0.0
    %v2779 = vrot.slane %v2778, 4
    %v2780 = vadd.f32 %v2778, %v2779
    %v2781 = vrot.slane %v2780, 2
    %v2782 = vadd.f32 %v2780, %v2781
    %v2783 = vrot.slane %v2782, 1
    %v2784 = vadd.f32 %v2782, %v2783
    %v2785 = vsel %vm2742, %v2732, 0.0
    %v2786 = vrot.slane %v2785, 4
    %v2787 = vadd.f32 %v2785, %v2786
    %v2788 = vrot.slane %v2787, 2
    %v2789 = vadd.f32 %v2787, %v2788
    %v2790 = vrot.slane %v2789, 1
    %v2791 = vadd.f32 %v2789, %v2790
    %v2792 = vsel %vm2742, %v2733, 0.0
    %v2793 = vrot.slane %v2792, 4
    %v2794 = vadd.f32 %v2792, %v2793
    %v2795 = vrot.slane %v2794, 2
    %v2796 = vadd.f32 %v2794, %v2795
    %v2797 = vrot.slane %v2796, 1
    %v2798 = vadd.f32 %v2796, %v2797
    %v2799 = vsel %vm2742, %v2734, 0.0
    %v2800 = vrot.slane %v2799, 4
    %v2801 = vadd.f32 %v2799, %v2800
    %v2802 = vrot.slane %v2801, 2
    %v2803 = vadd.f32 %v2801, %v2802
    %v2804 = vrot.slane %v2803, 1
    %v2805 = vadd.f32 %v2803, %v2804
    %v2806 = vsel %vm2742, %v2735, 0.0
    %v2807 = vrot.slane %v2806, 4
    %v2808 = vadd.f32 %v2806, %v2807
    %v2809 = vrot.slane %v2808, 2
    %v2810 = vadd.f32 %v2808, %v2809
    %v2811 = vrot.slane %v2810, 1
    %v2812 = vadd.f32 %v2810, %v2811
    %v2813 = vsel %vm2742, %v2736, 0.0
    %v2814 = vrot.slane %v2813, 4
    %v2815 = vadd.f32 %v2813, %v2814
    %v2816 = vrot.slane %v2815, 2
    %v2817 = vadd.f32 %v2815, %v2816
    %v2818 = vrot.slane %v2817, 1
    %v2819 = vadd.f32 %v2817, %v2818
    %v2820 = vsel %vm2742, %v2737, 0.0
    %v2821 = vrot.slane %v2820, 4
    %v2822 = vadd.f32 %v2820, %v2821
    %v2823 = vrot.slane %v2822, 2
    %v2824 = vadd.f32 %v2822, %v2823
    %v2825 = vrot.slane %v2824, 1
    %v2826 = vadd.f32 %v2824, %v2825
    %v2827 = vsel %vm2742, %v2738, 0.0
    %v2828 = vrot.slane %v2827, 4
    %v2829 = vadd.f32 %v2827, %v2828
    %v2830 = vrot.slane %v2829, 2
    %v2831 = vadd.f32 %v2829, %v2830
    %v2832 = vrot.slane %v2831, 1
    %v2833 = vadd.f32 %v2831, %v2832
    %v2834 = vsel %vm2742, %v2739, 0.0
    %v2835 = vrot.slane %v2834, 4
    %v2836 = vadd.f32 %v2834, %v2835
    %v2837 = vrot.slane %v2836, 2
    %v2838 = vadd.f32 %v2836, %v2837
    %v2839 = vrot.slane %v2838, 1
    %v2840 = vadd.f32 %v2838, %v2839
    %v2841 = vsel %vm2742, %v2740, 0.0
    %v2842 = vrot.slane %v2841, 4
    %v2843 = vadd.f32 %v2841, %v2842
    %v2844 = vrot.slane %v2843, 2
    %v2845 = vadd.f32 %v2843, %v2844
    %v2846 = vrot.slane %v2845, 1
    %v2847 = vadd.f32 %v2845, %v2846
    %v2848 = vsel %vm2742, %v2741, 0.0
    %v2849 = vrot.slane %v2848, 4
    %v2850 = vadd.f32 %v2848, %v2849
    %v2851 = vrot.slane %v2850, 2
    %v2852 = vadd.f32 %v2850, %v2851
    %v2853 = vrot.slane %v2852, 1
    %v2854 = vadd.f32 %v2852, %v2853
    %v2855 = vpack.c.bf16 %v2540, %v2540
    %v2856 = vpack.c.bf16 %v2547, %v2547
    %v2857 = vpack.c.bf16 %v2554, %v2554
    %v2858 = vpack.c.bf16 %v2561, %v2561
    %v2859 = vpack.c.bf16 %v2568, %v2568
    %v2860 = vpack.c.bf16 %v2575, %v2575
    %v2861 = vpack.c.bf16 %v2582, %v2582
    %v2862 = vpack.c.bf16 %v2589, %v2589
    %v2863 = vpack.c.bf16 %v2596, %v2596
    %v2864 = vpack.c.bf16 %v2603, %v2603
    %v2865 = vpack.c.bf16 %v2610, %v2610
    %v2866 = vpack.c.bf16 %v2617, %v2617
    %v2867 = vpack.c.bf16 %v2624, %v2624
    %v2868 = vpack.c.bf16 %v2631, %v2631
    %v2869 = vpack.c.bf16 %v2638, %v2638
    %v2870 = vpack.c.bf16 %v2645, %v2645
    %v2871 = vpack.c.bf16 %v2749, %v2749
    %v2872 = vpack.c.bf16 %v2756, %v2756
    %v2873 = vpack.c.bf16 %v2763, %v2763
    %v2874 = vpack.c.bf16 %v2770, %v2770
    %v2875 = vpack.c.bf16 %v2777, %v2777
    %v2876 = vpack.c.bf16 %v2784, %v2784
    %v2877 = vpack.c.bf16 %v2791, %v2791
    %v2878 = vpack.c.bf16 %v2798, %v2798
    %v2879 = vpack.c.bf16 %v2805, %v2805
    %v2880 = vpack.c.bf16 %v2812, %v2812
    %v2881 = vpack.c.bf16 %v2819, %v2819
    %v2882 = vpack.c.bf16 %v2826, %v2826
    %v2883 = vpack.c.bf16 %v2833, %v2833
    %v2884 = vpack.c.bf16 %v2840, %v2840
    %v2885 = vpack.c.bf16 %v2847, %v2847
    %v2886 = vpack.c.bf16 %v2854, %v2854
    %v2903 = vunpack.c.l.b16 %v2871
    %v2904 = vunpack.c.l.b16 %v2872
    %v2905 = vunpack.c.l.b16 %v2873
    %v2906 = vunpack.c.l.b16 %v2874
    %v2907 = vunpack.c.l.b16 %v2875
    %v2908 = vunpack.c.l.b16 %v2876
    %v2909 = vunpack.c.l.b16 %v2877
    %v2910 = vunpack.c.l.b16 %v2878
    %v2911 = vunpack.c.l.b16 %v2879
    %v2912 = vunpack.c.l.b16 %v2880
    %v2913 = vunpack.c.l.b16 %v2881
    %v2914 = vunpack.c.l.b16 %v2882
    %v2915 = vunpack.c.l.b16 %v2883
    %v2916 = vunpack.c.l.b16 %v2884
    %v2917 = vunpack.c.l.b16 %v2885
    %v2918 = vunpack.c.l.b16 %v2886
    %v2919 = vsel %vm697, %v2904, %v2903
    %v2920 = vsel %vm700, %v2905, %v2919
    %v2921 = vsel %vm703, %v2906, %v2920
    %v2922 = vsel %vm706, %v2907, %v2921
    %v2923 = vsel %vm709, %v2908, %v2922
    %v2924 = vsel %vm712, %v2909, %v2923
    %v2925 = vsel %vm715, %v2910, %v2924
    %v2926 = vsel %vm697, %v2912, %v2911
    %v2927 = vsel %vm700, %v2913, %v2926
    %v2928 = vsel %vm703, %v2914, %v2927
    %v2929 = vsel %vm706, %v2915, %v2928
    %v2930 = vsel %vm709, %v2916, %v2929
    %v2931 = vsel %vm712, %v2917, %v2930
    %v2932 = vsel %vm715, %v2918, %v2931
    %v2933 = vpack.c.b16 %v2932, %v2925
    %2934 = vrot.lane.b32.xlu0 %v2933, 64
    %v2935 = vpop.permute.xlu0 %2934
    %v2944 = vunpack.c.l.b16 %v169
    %v2945 = vunpack.c.l.b16 %v170
    %v2946 = vunpack.c.l.b16 %v171
    %v2947 = vunpack.c.l.b16 %v172
    %v2948 = vunpack.c.l.b16 %v173
    %v2949 = vunpack.c.l.b16 %v174
    %v2950 = vunpack.c.l.b16 %v175
    %v2951 = vunpack.c.l.b16 %v176
    %v2952 = vpack.c.b16 %v2945, %v2944
    %v2953 = vpack.c.b16 %v2947, %v2946
    %v2954 = vpack.c.b16 %v2949, %v2948
    %v2955 = vpack.c.b16 %v2951, %v2950
    %v2961 = vsel %vm1020, %v2935, 0
    %2963 = vmatprep.subr.bf16.mxu0 0
    %2964 = vmatpush1.bf16.msra.mxu0 %v2952
    %2965 = vmatprep.subr.bf16.mxu0 0
    %2966 = vmatpush1.bf16.msra.mxu0 %v2953
    %2967 = vmatprep.subr.bf16.mxu0 0
    %2968 = vmatpush1.bf16.msra.mxu0 %v2954
    %2969 = vmatprep.subr.bf16.mxu0 0
    %2970 = vmatpush1.bf16.msra.mxu0 %v2955
    %2971 = vmatprep.subr.bf16.mxu0 0
    %2972 = vmatpush1.bf16.msra.mxu0 0
    %2973 = vmatprep.subr.bf16.mxu0 0
    %2974 = vmatpush1.bf16.msra.mxu0 0
    %2975 = vmatprep.subr.bf16.mxu0 0
    %2976 = vmatpush1.bf16.msra.mxu0 0
    %2977 = vmatprep.subr.bf16.mxu0 0
    %2978 = vmatpush1.bf16.msra.mxu0 0
    %2979 = vmatprep.subr.bf16.mxu0 0
    %2980 = vmatpush1.bf16.msra.mxu0 0
    %2981 = vmatprep.subr.bf16.mxu0 0
    %2982 = vmatpush1.bf16.msra.mxu0 0
    %2983 = vmatprep.subr.bf16.mxu0 0
    %2984 = vmatpush1.bf16.msra.mxu0 0
    %2985 = vmatprep.subr.bf16.mxu0 0
    %2986 = vmatpush1.bf16.msra.mxu0 0
    %2987 = vmatprep.subr.bf16.mxu0 0
    %2988 = vmatpush1.bf16.msra.mxu0 0
    %2989 = vmatprep.subr.bf16.mxu0 0
    %2990 = vmatpush1.bf16.msra.mxu0 0
    %2991 = vmatprep.subr.bf16.mxu0 0
    %2992 = vmatpush1.bf16.msra.mxu0 0
    %2993 = vmatprep.subr.bf16.mxu0 0
    %2994 = vmatpush1.bf16.msra.mxu0 0
    %2995 = vmatprep.mubr.bf16.mxu0 0
    %2996 = vmatmul.mubr.bf16.gmra.mrb[0].mxu0 %v2961
    %v2997 = vpop.f32.mrb[0].mxu0
    %v2998 = vadd.f32 0.0, %v2997
    %v2999 = vpop.f32.mrb[0].mxu0
    %v3000 = vpop.f32.mrb[0].mxu0
    %v3001 = vadd.f32 0.0, %v3000
    %v3002 = vpop.f32.mrb[0].mxu0
    %3003 = vdwg.mxu0
    %v3020 = vunpack.c.l.b16 %v2855
    %v3021 = vunpack.c.l.b16 %v2856
    %v3022 = vunpack.c.l.b16 %v2857
    %v3023 = vunpack.c.l.b16 %v2858
    %v3024 = vunpack.c.l.b16 %v2859
    %v3025 = vunpack.c.l.b16 %v2860
    %v3026 = vunpack.c.l.b16 %v2861
    %v3027 = vunpack.c.l.b16 %v2862
    %v3028 = vunpack.c.l.b16 %v2863
    %v3029 = vunpack.c.l.b16 %v2864
    %v3030 = vunpack.c.l.b16 %v2865
    %v3031 = vunpack.c.l.b16 %v2866
    %v3032 = vunpack.c.l.b16 %v2867
    %v3033 = vunpack.c.l.b16 %v2868
    %v3034 = vunpack.c.l.b16 %v2869
    %v3035 = vunpack.c.l.b16 %v2870
    %v3036 = vsel %vm697, %v3021, %v3020
    %v3037 = vsel %vm700, %v3022, %v3036
    %v3038 = vsel %vm703, %v3023, %v3037
    %v3039 = vsel %vm706, %v3024, %v3038
    %v3040 = vsel %vm709, %v3025, %v3039
    %v3041 = vsel %vm712, %v3026, %v3040
    %v3042 = vsel %vm715, %v3027, %v3041
    %v3043 = vsel %vm697, %v3029, %v3028
    %v3044 = vsel %vm700, %v3030, %v3043
    %v3045 = vsel %vm703, %v3031, %v3044
    %v3046 = vsel %vm706, %v3032, %v3045
    %v3047 = vsel %vm709, %v3033, %v3046
    %v3048 = vsel %vm712, %v3034, %v3047
    %v3049 = vsel %vm715, %v3035, %v3048
    %v3050 = vpack.c.b16 %v3049, %v3042
    %v3059 = vunpack.c.l.b16 %v161
    %v3060 = vunpack.c.l.b16 %v162
    %v3061 = vunpack.c.l.b16 %v163
    %v3062 = vunpack.c.l.b16 %v164
    %v3063 = vunpack.c.l.b16 %v165
    %v3064 = vunpack.c.l.b16 %v166
    %v3065 = vunpack.c.l.b16 %v167
    %v3066 = vunpack.c.l.b16 %v168
    %v3067 = vpack.c.b16 %v3060, %v3059
    %v3068 = vpack.c.b16 %v3062, %v3061
    %v3069 = vpack.c.b16 %v3064, %v3063
    %v3070 = vpack.c.b16 %v3066, %v3065
    %v3076 = vsel %vm1020, %v3050, 0
    %3078 = vmatprep.subr.bf16.mxu0 0
    %3079 = vmatpush1.bf16.msra.mxu0 %v3067
    %3080 = vmatprep.subr.bf16.mxu0 0
    %3081 = vmatpush1.bf16.msra.mxu0 %v3068
    %3082 = vmatprep.subr.bf16.mxu0 0
    %3083 = vmatpush1.bf16.msra.mxu0 %v3069
    %3084 = vmatprep.subr.bf16.mxu0 0
    %3085 = vmatpush1.bf16.msra.mxu0 %v3070
    %3086 = vmatprep.subr.bf16.mxu0 0
    %3087 = vmatpush1.bf16.msra.mxu0 0
    %3088 = vmatprep.subr.bf16.mxu0 0
    %3089 = vmatpush1.bf16.msra.mxu0 0
    %3090 = vmatprep.subr.bf16.mxu0 0
    %3091 = vmatpush1.bf16.msra.mxu0 0
    %3092 = vmatprep.subr.bf16.mxu0 0
    %3093 = vmatpush1.bf16.msra.mxu0 0
    %3094 = vmatprep.subr.bf16.mxu0 0
    %3095 = vmatpush1.bf16.msra.mxu0 0
    %3096 = vmatprep.subr.bf16.mxu0 0
    %3097 = vmatpush1.bf16.msra.mxu0 0
    %3098 = vmatprep.subr.bf16.mxu0 0
    %3099 = vmatpush1.bf16.msra.mxu0 0
    %3100 = vmatprep.subr.bf16.mxu0 0
    %3101 = vmatpush1.bf16.msra.mxu0 0
    %3102 = vmatprep.subr.bf16.mxu0 0
    %3103 = vmatpush1.bf16.msra.mxu0 0
    %3104 = vmatprep.subr.bf16.mxu0 0
    %3105 = vmatpush1.bf16.msra.mxu0 0
    %3106 = vmatprep.subr.bf16.mxu0 0
    %3107 = vmatpush1.bf16.msra.mxu0 0
    %3108 = vmatprep.subr.bf16.mxu0 0
    %3109 = vmatpush1.bf16.msra.mxu0 0
    %3110 = vmatprep.mubr.bf16.mxu0 0
    %3111 = vmatmul.mubr.bf16.gmra.mrb[0].mxu0 %v3076
    %v3112 = vpop.f32.mrb[0].mxu0
    %v3113 = vadd.f32 %v2998, %v3112
    %v3114 = vpop.f32.mrb[0].mxu0
    %v3115 = vpop.f32.mrb[0].mxu0
    %v3116 = vadd.f32 %v3001, %v3115
    %v3117 = vpop.f32.mrb[0].mxu0
    %3118 = vdwg.mxu0
    %v3119 = vlaneseq
    %v3120 = vshrl.u32 %v3119, 7
    %v3121 = vsub.s32 0, %v3120
    %v3122 = vrot.slane %v123, %v3121
    %v3123 = vadd.f32 %v3113, %v3122
    %v3124 = vadd.f32 %v3116, %v3122
    %v3125 = vpack.c.bf16 %v3124, %v3123
    %v3126 = vlaneseq
    %v3127 = vshrl.u32 %v3126, 7
    %v3128 = vsub.s32 0, %v3127
    %v3129 = vrot.slane %v124, %v3128
    %v3146 = vunpack.c.l.b16 %v177
    %v3147 = vunpack.c.l.b16 %v178
    %v3148 = vunpack.c.l.b16 %v179
    %v3149 = vunpack.c.l.b16 %v180
    %v3150 = vunpack.c.l.b16 %v181
    %v3151 = vunpack.c.l.b16 %v182
    %v3152 = vunpack.c.l.b16 %v183
    %v3153 = vunpack.c.l.b16 %v184
    %v3154 = vunpack.c.l.b16 %v185
    %v3155 = vunpack.c.l.b16 %v186
    %v3156 = vunpack.c.l.b16 %v187
    %v3157 = vunpack.c.l.b16 %v188
    %v3158 = vunpack.c.l.b16 %v189
    %v3159 = vunpack.c.l.b16 %v190
    %v3160 = vunpack.c.l.b16 %v191
    %v3161 = vunpack.c.l.b16 %v192
    %v3162 = vpack.c.b16 %v3147, %v3146
    %v3163 = vpack.c.b16 %v3149, %v3148
    %v3164 = vpack.c.b16 %v3151, %v3150
    %v3165 = vpack.c.b16 %v3153, %v3152
    %v3166 = vpack.c.b16 %v3155, %v3154
    %v3167 = vpack.c.b16 %v3157, %v3156
    %v3168 = vpack.c.b16 %v3159, %v3158
    %v3169 = vpack.c.b16 %v3161, %v3160
    %3178 = vmatprep.subr.bf16.mxu0 0
    %3179 = vmatpush1.bf16.msra.mxu0 %v3162
    %3180 = vmatprep.subr.bf16.mxu0 0
    %3181 = vmatpush1.bf16.msra.mxu0 %v3163
    %3182 = vmatprep.subr.bf16.mxu0 0
    %3183 = vmatpush1.bf16.msra.mxu0 %v3164
    %3184 = vmatprep.subr.bf16.mxu0 0
    %3185 = vmatpush1.bf16.msra.mxu0 %v3165
    %3186 = vmatprep.subr.bf16.mxu0 0
    %3187 = vmatpush1.bf16.msra.mxu0 %v3166
    %3188 = vmatprep.subr.bf16.mxu0 0
    %3189 = vmatpush1.bf16.msra.mxu0 %v3167
    %3190 = vmatprep.subr.bf16.mxu0 0
    %3191 = vmatpush1.bf16.msra.mxu0 %v3168
    %3192 = vmatprep.subr.bf16.mxu0 0
    %3193 = vmatpush1.bf16.msra.mxu0 %v3169
    %3194 = vmatprep.subr.bf16.mxu0 0
    %3195 = vmatpush1.bf16.msra.mxu0 0
    %3196 = vmatprep.subr.bf16.mxu0 0
    %3197 = vmatpush1.bf16.msra.mxu0 0
    %3198 = vmatprep.subr.bf16.mxu0 0
    %3199 = vmatpush1.bf16.msra.mxu0 0
    %3200 = vmatprep.subr.bf16.mxu0 0
    %3201 = vmatpush1.bf16.msra.mxu0 0
    %3202 = vmatprep.subr.bf16.mxu0 0
    %3203 = vmatpush1.bf16.msra.mxu0 0
    %3204 = vmatprep.subr.bf16.mxu0 0
    %3205 = vmatpush1.bf16.msra.mxu0 0
    %3206 = vmatprep.subr.bf16.mxu0 0
    %3207 = vmatpush1.bf16.msra.mxu0 0
    %3208 = vmatprep.subr.bf16.mxu0 0
    %3209 = vmatpush1.bf16.msra.mxu0 0
    %3210 = vmatprep.mubr.bf16.mxu0 0
    %3211 = vmatmul.mubr.bf16.gmra.mrb[0].mxu0 %v3125
    %v3212 = vpop.f32.mrb[0].mxu0
    %v3213 = vadd.f32 %v3129, %v3212
    %v3214 = vpop.f32.mrb[0].mxu0
    %v3215 = vpop.f32.mrb[0].mxu0
    %v3216 = vadd.f32 %v3129, %v3215
    %v3217 = vpop.f32.mrb[0].mxu0
    %3218 = vdwg.mxu0
    %v3219 = vtanh.pop %v3213
    %v3220 = vtanh.pop %v3216
    %v3221 = vpack.c.bf16 %v3220, %v3219
    %v3222 = vld [vmem:[#allocation11] sm:$0xf]
    %v3223 = vld [vmem:[#allocation11 + $0x4] sm:$0xf]
    %v3224 = vld [vmem:[#allocation11 + $0x8] sm:$0xf]
    %v3225 = vld [vmem:[#allocation11 + $0xc] sm:$0xf]
    %v3226 = vld [vmem:[#allocation11 + $0x10] sm:$0xf]
    %v3227 = vld [vmem:[#allocation11 + $0x14] sm:$0xf]
    %v3228 = vld [vmem:[#allocation11 + $0x18] sm:$0xf]
    %v3229 = vld [vmem:[#allocation11 + $0x1c] sm:$0xf]
    %v3230 = vld [vmem:[#allocation11 + $0x20] sm:$0xf]
    %v3231 = vld [vmem:[#allocation11 + $0x24] sm:$0xf]
    %v3232 = vld [vmem:[#allocation11 + $0x28] sm:$0xf]
    %v3233 = vld [vmem:[#allocation11 + $0x2c] sm:$0xf]
    %v3234 = vld [vmem:[#allocation11 + $0x30] sm:$0xf]
    %v3235 = vld [vmem:[#allocation11 + $0x34] sm:$0xf]
    %v3236 = vld [vmem:[#allocation11 + $0x38] sm:$0xf]
    %v3237 = vld [vmem:[#allocation11 + $0x3c] sm:$0xf]
    %v3238 = vld [vmem:[#allocation13] sm:$0x1]
    %v3240 = vlaneseq
    %v3241 = vshrl.u32 %v3240, 7
    %v3242 = vsub.s32 0, %v3241
    %v3243 = vrot.slane %v3238, %v3242
    %v3261 = vunpack.c.l.b16 %v3222
    %v3262 = vunpack.c.l.b16 %v3223
    %v3263 = vunpack.c.l.b16 %v3224
    %v3264 = vunpack.c.l.b16 %v3225
    %v3265 = vunpack.c.l.b16 %v3226
    %v3266 = vunpack.c.l.b16 %v3227
    %v3267 = vunpack.c.l.b16 %v3228
    %v3268 = vunpack.c.l.b16 %v3229
    %v3269 = vunpack.c.l.b16 %v3230
    %v3270 = vunpack.c.l.b16 %v3231
    %v3271 = vunpack.c.l.b16 %v3232
    %v3272 = vunpack.c.l.b16 %v3233
    %v3273 = vunpack.c.l.b16 %v3234
    %v3274 = vunpack.c.l.b16 %v3235
    %v3275 = vunpack.c.l.b16 %v3236
    %v3276 = vunpack.c.l.b16 %v3237
    %v3277 = vpack.c.b16 %v3262, %v3261
    %v3278 = vpack.c.b16 %v3264, %v3263
    %v3279 = vpack.c.b16 %v3266, %v3265
    %v3280 = vpack.c.b16 %v3268, %v3267
    %v3281 = vpack.c.b16 %v3270, %v3269
    %v3282 = vpack.c.b16 %v3272, %v3271
    %v3283 = vpack.c.b16 %v3274, %v3273
    %v3284 = vpack.c.b16 %v3276, %v3275
    %3293 = vmatprep.subr.bf16.mxu0 0
    %3294 = vmatpush1.bf16.msra.mxu0 %v3277
    %3295 = vmatprep.subr.bf16.mxu0 0
    %3296 = vmatpush1.bf16.msra.mxu0 %v3278
    %3297 = vmatprep.subr.bf16.mxu0 0
    %3298 = vmatpush1.bf16.msra.mxu0 %v3279
    %3299 = vmatprep.subr.bf16.mxu0 0
    %3300 = vmatpush1.bf16.msra.mxu0 %v3280
    %3301 = vmatprep.subr.bf16.mxu0 0
    %3302 = vmatpush1.bf16.msra.mxu0 %v3281
    %3303 = vmatprep.subr.bf16.mxu0 0
    %3304 = vmatpush1.bf16.msra.mxu0 %v3282
    %3305 = vmatprep.subr.bf16.mxu0 0
    %3306 = vmatpush1.bf16.msra.mxu0 %v3283
    %3307 = vmatprep.subr.bf16.mxu0 0
    %3308 = vmatpush1.bf16.msra.mxu0 %v3284
    %3309 = vmatprep.subr.bf16.mxu0 0
    %3310 = vmatpush1.bf16.msra.mxu0 0
    %3311 = vmatprep.subr.bf16.mxu0 0
    %3312 = vmatpush1.bf16.msra.mxu0 0
    %3313 = vmatprep.subr.bf16.mxu0 0
    %3314 = vmatpush1.bf16.msra.mxu0 0
    %3315 = vmatprep.subr.bf16.mxu0 0
    %3316 = vmatpush1.bf16.msra.mxu0 0
    %3317 = vmatprep.subr.bf16.mxu0 0
    %3318 = vmatpush1.bf16.msra.mxu0 0
    %3319 = vmatprep.subr.bf16.mxu0 0
    %3320 = vmatpush1.bf16.msra.mxu0 0
    %3321 = vmatprep.subr.bf16.mxu0 0
    %3322 = vmatpush1.bf16.msra.mxu0 0
    %3323 = vmatprep.subr.bf16.mxu0 0
    %3324 = vmatpush1.bf16.msra.mxu0 0
    %3325 = vmatprep.mubr.bf16.mxu0 0
    %3326 = vmatmul.mubr.bf16.gmra.mrb[0].mxu0 %v3221
    %v3327 = vpop.f32.mrb[0].mxu0
    %v3328 = vadd.f32 %v3243, %v3327
    %v3329 = vpop.f32.mrb[0].mxu0
    %v3330 = vpop.f32.mrb[0].mxu0
    %v3331 = vadd.f32 %v3243, %v3330
    %v3332 = vpop.f32.mrb[0].mxu0
    %3333 = vdwg.mxu0
    %3334 = vst [vmem:[#allocation14] sm:$0xff] %v3328
    %3335 = vst [vmem:[#allocation14 + $0x8] sm:$0xff] %v3331
    // Predicated region
    $region58: #{_lambda_.1} parent=1 // pred_check
      _
    $region59: #{_lambda_.1} parent=1 // pred_check_branch
      %3337 = sbr.rel (0) target = $region61
    $region60: #{_lambda_.1} parent=1 // pred_region
      %s3339 = ssub.s32 256, 256
      %3340 = vsyncadd [#allocation4], %s3339
      %s3341 = sshll.u32 [#allocation14], 4
      %s3342 = int_to_ptr.vmem [resolvable:$true] %s3341
      %3347 = dma.vmem_to_hbm [thread:$0]  %s3342, 256, %s7, [#allocation4], 128, 128, 8
    $region61: #{_lambda_.1} parent=1 // pred_fallthru
      _
    // Predicated region
    $region62: #{_lambda_.1} parent=1 // pred_check
      _
    $region63: #{_lambda_.1} parent=1 // pred_check_branch
      %3349 = sbr.rel (0) target = $region65
    $region64: #{_lambda_.1} parent=1 // pred_region
      %3350 = dma.done [#allocation4], 256
    $region65: #{_lambda_.1} parent=1 // pred_fallthru
      _
    %3351 = vsyncpa [#allocation3], 1
    %3352 = vsyncpa [#allocation6], 1
    %3353 = vsyncpa [#allocation9], 1
    %3354 = vsyncpa [#allocation12], 1
    %3355 = vsyncpa [#allocation4], 1

</llo_original>
